<compile_context>
chip_gen: v7x
topology: tpu7x:2x2x1
jax: 0.10.0
libtpu: 0.0.40
codegen_flags: <defaults>
</compile_context>

<pallas_src>
import jax
import jax.numpy as jnp
from jax.experimental import pallas as pl
from jax.experimental.pallas import tpu as pltpu


def _vae_kernel(x_ref, eps_ref,
                w1_ref, b1_ref, w2_ref, b2_ref,     # encoder
                wh_ref, bh_ref,                     # fused mean|var heads
                wd1_ref, bd1_ref, wd2_ref, bd2_ref, # decoder
                out_ref):
    f32 = jnp.float32
    bf16 = jnp.bfloat16
    H = eps_ref.shape[-1]

    # x arrives f32; cast to bf16 in-kernel (cheap VPU op hidden under the
    # DMA pipeline, saves a wrapper-side HBM pass).
    x = x_ref[...].astype(bf16)

    # ---- encoder: Linear(D_in, D_in) -> ReLU -> Linear(D_in, H) -> ReLU ----
    h1 = jnp.dot(x, w1_ref[...], preferred_element_type=f32) + b1_ref[...]
    h1 = jnp.maximum(h1, 0.0).astype(bf16)
    enc = jnp.dot(h1, w2_ref[...], preferred_element_type=f32) + b2_ref[...]
    enc = jnp.maximum(enc, 0.0).astype(bf16)

    # ---- fused latent heads: one (H, 2H) matmul, then slice mu | var ----
    heads = jnp.dot(enc, wh_ref[...], preferred_element_type=f32) + bh_ref[...]
    mu = heads[:, :H]
    logvar = 0.5 * jnp.exp(heads[:, H:])   # matches the PyTorch module as written
    # TODO(synk): exp() is unclamped, exactly as in the PyTorch module; clamp
    # the pre-activation if inputs are not guaranteed small.

    # ---- reparameterization: latent = mu + eps * logvar (f32 elementwise) ----
    latent = mu + eps_ref[...] * logvar

    # ---- decoder: ReLU -> Linear(H, D_out) -> ReLU -> Linear(D_out, D_out) ----
    d = jnp.maximum(latent, 0.0).astype(bf16)
    d = jnp.dot(d, wd1_ref[...], preferred_element_type=f32) + bd1_ref[...]
    d = jnp.maximum(d, 0.0).astype(bf16)
    dec = jnp.dot(d, wd2_ref[...], preferred_element_type=f32) + bd2_ref[...]

    # single lane-dense bf16 store: [dec | mu | logvar] -> (TB, D_out + 2H)
    out_ref[...] = jnp.concatenate([dec, mu, logvar], axis=-1).astype(out_ref.dtype)


def _ceil_to(x, m):
    return -(-x // m) * m


def _choose_tiling(B, max_rows_per_step=1024):
    """Collapse the grid: 1 fat step for small B; even #steps for large B."""
    Bp8 = _ceil_to(B, 8)
    if Bp8 <= max_rows_per_step:
        steps = 1
    else:
        steps = -(-Bp8 // max_rows_per_step)
        if steps % 2:
            steps += 1          # even step count balances v7x's 2 TensorCores
    tb = _ceil_to(-(-Bp8 // steps), 8)
    return tb, steps * tb


def vae_forward(x, eps, params):
    """x: (B, D_in) f32, eps: (B, H) f32 standard-normal noise."""
    B, D_in = x.shape
    H = params["wm"].shape[1]
    D_out = params["wd2"].shape[1]
    D_pack = D_out + 2 * H

    tb, Bp = _choose_tiling(B)
    if Bp != B:
        # TODO(synk): for very large B, replace this pad with an in-kernel row
        # mask on the ragged last tile to avoid an extra HBM pass over x/eps.
        x = jnp.pad(x, ((0, Bp - B), (0, 0)))
        eps = jnp.pad(eps, ((0, Bp - B), (0, 0)))

    bf16 = jnp.bfloat16

    # Pre-transpose/fuse params (weights bf16 for the MXU, biases stay f32).
    w1 = params["w1"].astype(bf16)
    w2 = params["w2"].astype(bf16)
    wh = jnp.concatenate([params["wm"], params["wv"]], axis=1).astype(bf16)
    bh = jnp.concatenate([params["bm"], params["bv"]], axis=1)
    wd1 = params["wd1"].astype(bf16)
    wd2 = params["wd2"].astype(bf16)

    args = (x, eps,
            w1, params["b1"], w2, params["b2"],
            wh, bh,
            wd1, params["bd1"], wd2, params["bd2"])

    grid = (Bp // tb,)

    def row_spec(feat):
        return pl.BlockSpec((tb, feat), lambda i: (i, 0))

    def const_spec(arr):
        # Whole-array block, same tile every grid step -> DMA'd once,
        # VMEM-resident weights/biases.
        return pl.BlockSpec(arr.shape, lambda i: (0, 0))

    in_specs = [row_spec(D_in), row_spec(H)] + [const_spec(a) for a in args[2:]]
    out_spec = pl.BlockSpec((tb, D_pack), lambda i: (i, 0))

    flops = 2 * Bp * (D_in * D_in + D_in * H + H * 2 * H + H * D_out + D_out * D_out)
    bytes_accessed = (x.size * 4 + eps.size * 4
                      + sum(int(a.size) * a.dtype.itemsize for a in args[2:])
                      + Bp * D_pack * 2)
    cost = pl.CostEstimate(flops=int(flops),
                           transcendentals=int(Bp * H),
                           bytes_accessed=int(bytes_accessed))

    packed = pl.pallas_call(
        _vae_kernel,
        out_shape=jax.ShapeDtypeStruct((Bp, D_pack), bf16),
        grid=grid,
        in_specs=in_specs,
        out_specs=out_spec,
        compiler_params=pltpu.CompilerParams(
            dimension_semantics=("parallel",),
            vmem_limit_bytes=32 * 1024 * 1024),
        cost_estimate=cost,
    )(*args)

    # Slice + upcast fuse into one XLA pass over the (small) packed slab.
    dec = packed[:B, :D_out].astype(jnp.float32)
    mu = packed[:B, D_out:D_out + H].astype(jnp.float32)
    logvar = packed[:B, D_out + H:].astype(jnp.float32)
    return dec, mu, logvar


def init_params(key, D_in, H, D_out):
    """Deterministic synthetic init; weights stored as (in, out)."""
    def linear(k, fan_in, fan_out):
        kw, kb = jax.random.split(k)
        bound = 1.0 / jnp.sqrt(fan_in)
        w = jax.random.uniform(kw, (fan_in, fan_out), jnp.float32, -bound, bound)
        b = jax.random.uniform(kb, (1, fan_out), jnp.float32, -bound, bound)
        return w, b

    ks = jax.random.split(key, 7)
    p = {}
    p["w1"], p["b1"] = linear(ks[0], D_in, D_in)      # encoder[0]
    p["w2"], p["b2"] = linear(ks[1], D_in, H)         # encoder[2]
    p["wm"], p["bm"] = linear(ks[2], H, H)            # mean
    p["wv"], p["bv"] = linear(ks[3], H, H)            # var
    p["wd1"], p["bd1"] = linear(ks[4], H, D_out)      # decoder[1]
    p["wd2"], p["bd2"] = linear(ks[5], D_out, D_out)  # decoder[3]
    return p


def vae_ref(x, eps, p):
    """Pure-JAX reference mirroring the PyTorch forward, with the same bf16
    quantization of matmul operands and of the packed output that the kernel
    applies (f32 accumulation / elementwise math)."""
    q = lambda a: a.astype(jnp.bfloat16).astype(jnp.float32)
    xq = q(x)
    h = jnp.maximum(xq @ q(p["w1"]) + p["b1"], 0.0)
    enc = jnp.maximum(q(h) @ q(p["w2"]) + p["b2"], 0.0)
    encq = q(enc)
    mu = encq @ q(p["wm"]) + p["bm"]
    logvar = 0.5 * jnp.exp(encq @ q(p["wv"]) + p["bv"])
    latent = mu + eps * logvar
    d = jnp.maximum(latent, 0.0)
    d = jnp.maximum(q(d) @ q(p["wd1"]) + p["bd1"], 0.0)
    dec = q(d) @ q(p["wd2"]) + p["bd2"]
    # Kernel stores the packed slab in bf16.
    return q(dec), q(mu), q(logvar)


if __name__ == "__main__":
    # D_out + 2H = 128 -> packed output is exactly one vreg lane width.
    B, D_in, H, D_out = 260, 64, 32, 64
    key = jax.random.PRNGKey(0)
    k_x, k_eps, k_p = jax.random.split(key, 3)

    x = jax.random.normal(k_x, (B, D_in), jnp.float32)
    eps = jax.random.normal(k_eps, (B, H), jnp.float32)  # torch.randn_like(encoded)
    params = init_params(k_p, D_in, H, D_out)

    dec, mu, logvar = vae_forward(x, eps, params)
    jax.block_until_ready((dec, mu, logvar))

    dec_r, mu_r, logvar_r = vae_ref(x, eps, params)
    assert dec.shape == (B, D_out) and mu.shape == (B, H) and logvar.shape == (B, H)
    assert jnp.allclose(dec, dec_r, atol=2e-2, rtol=2e-2), "decoded mismatch"
    assert jnp.allclose(mu, mu_r, atol=2e-2, rtol=2e-2), "mu mismatch"
    assert jnp.allclose(logvar, logvar_r, atol=2e-2, rtol=2e-2), "logvar mismatch"

    print("KERNEL_OK")
</pallas_src>

<mosaic_0001>
module attributes {stable_mosaic.version = 11 : i64} {
  func.func @_vae_kernel(%arg0: i32, %arg1: memref<264x64xf32, #tpu.memory_space<vmem>>, %arg2: memref<264x32xf32, #tpu.memory_space<vmem>>, %arg3: memref<64x64xbf16, #tpu.memory_space<vmem>>, %arg4: memref<1x64xf32, #tpu.memory_space<vmem>>, %arg5: memref<64x32xbf16, #tpu.memory_space<vmem>>, %arg6: memref<1x32xf32, #tpu.memory_space<vmem>>, %arg7: memref<32x64xbf16, #tpu.memory_space<vmem>>, %arg8: memref<1x64xf32, #tpu.memory_space<vmem>>, %arg9: memref<32x64xbf16, #tpu.memory_space<vmem>>, %arg10: memref<1x64xf32, #tpu.memory_space<vmem>>, %arg11: memref<64x64xbf16, #tpu.memory_space<vmem>>, %arg12: memref<1x64xf32, #tpu.memory_space<vmem>>, %arg13: memref<264x128xbf16, #tpu.memory_space<vmem>>) attributes {dimension_semantics = [#tpu.dimension_semantics<parallel>], iteration_bounds = array<i64: 1>, scalar_prefetch = 0 : i64, scratch_operands = 0 : i64, tpu.core_type = #tpu.core_type<tc>, window_params = [{transform_indices = @transform_0, window_bounds = array<i64: 264, 64>}, {transform_indices = @transform_1, window_bounds = array<i64: 264, 32>}, {pipeline_mode = #tpu.pipeline_mode<synchronous>, transform_indices = @transform_2, window_bounds = array<i64: 64, 64>}, {pipeline_mode = #tpu.pipeline_mode<synchronous>, transform_indices = @transform_3, window_bounds = array<i64: 1, 64>}, {pipeline_mode = #tpu.pipeline_mode<synchronous>, transform_indices = @transform_4, window_bounds = array<i64: 64, 32>}, {pipeline_mode = #tpu.pipeline_mode<synchronous>, transform_indices = @transform_5, window_bounds = array<i64: 1, 32>}, {pipeline_mode = #tpu.pipeline_mode<synchronous>, transform_indices = @transform_6, window_bounds = array<i64: 32, 64>}, {pipeline_mode = #tpu.pipeline_mode<synchronous>, transform_indices = @transform_7, window_bounds = array<i64: 1, 64>}, {pipeline_mode = #tpu.pipeline_mode<synchronous>, transform_indices = @transform_8, window_bounds = array<i64: 32, 64>}, {pipeline_mode = #tpu.pipeline_mode<synchronous>, transform_indices = @transform_9, window_bounds = array<i64: 1, 64>}, {pipeline_mode = #tpu.pipeline_mode<synchronous>, transform_indices = @transform_10, window_bounds = array<i64: 64, 64>}, {pipeline_mode = #tpu.pipeline_mode<synchronous>, transform_indices = @transform_11, window_bounds = array<i64: 1, 64>}, {transform_indices = @transform_12, window_bounds = array<i64: 264, 128>}]} {
    %c0 = arith.constant 0 : index
    %c0_0 = arith.constant 0 : index
    %0 = vector.load %arg1[%c0, %c0_0] : memref<264x64xf32, #tpu.memory_space<vmem>>, vector<264x64xf32>
    %1 = arith.truncf %0 : vector<264x64xf32> to vector<264x64xbf16>
    %c0_1 = arith.constant 0 : index
    %c0_2 = arith.constant 0 : index
    %2 = vector.load %arg3[%c0_1, %c0_2] : memref<64x64xbf16, #tpu.memory_space<vmem>>, vector<64x64xbf16>
    %cst = arith.constant dense<0.000000e+00> : vector<264x64xf32>
    %3 = tpu.matmul %1, %2, %cst {dimension_numbers = #tpu.dot_dimension_numbers<[1], [0], [0], [1], [0, 0, 1, 1], [], []>} : vector<264x64xbf16>, vector<64x64xbf16>, vector<264x64xf32> -> vector<264x64xf32>
    %c0_3 = arith.constant 0 : index
    %c0_4 = arith.constant 0 : index
    %4 = vector.load %arg4[%c0_3, %c0_4] : memref<1x64xf32, #tpu.memory_space<vmem>>, vector<1x64xf32>
    %5 = vector.broadcast %4 : vector<1x64xf32> to vector<264x64xf32>
    %6 = arith.addf %3, %5 : vector<264x64xf32>
    %cst_5 = arith.constant 0.000000e+00 : f32
    %7 = vector.broadcast %cst_5 : f32 to vector<264x64xf32>
    %8 = arith.maximumf %6, %7 : vector<264x64xf32>
    %9 = arith.truncf %8 : vector<264x64xf32> to vector<264x64xbf16>
    %c0_6 = arith.constant 0 : index
    %c0_7 = arith.constant 0 : index
    %10 = vector.load %arg5[%c0_6, %c0_7] : memref<64x32xbf16, #tpu.memory_space<vmem>>, vector<64x32xbf16>
    %cst_8 = arith.constant dense<0.000000e+00> : vector<264x32xf32>
    %11 = tpu.matmul %9, %10, %cst_8 {dimension_numbers = #tpu.dot_dimension_numbers<[1], [0], [0], [1], [0, 0, 1, 1], [], []>} : vector<264x64xbf16>, vector<64x32xbf16>, vector<264x32xf32> -> vector<264x32xf32>
    %c0_9 = arith.constant 0 : index
    %c0_10 = arith.constant 0 : index
    %12 = vector.load %arg6[%c0_9, %c0_10] : memref<1x32xf32, #tpu.memory_space<vmem>>, vector<1x32xf32>
    %13 = vector.broadcast %12 : vector<1x32xf32> to vector<264x32xf32>
    %14 = arith.addf %11, %13 : vector<264x32xf32>
    %cst_11 = arith.constant 0.000000e+00 : f32
    %15 = vector.broadcast %cst_11 : f32 to vector<264x32xf32>
    %16 = arith.maximumf %14, %15 : vector<264x32xf32>
    %17 = arith.truncf %16 : vector<264x32xf32> to vector<264x32xbf16>
    %c0_12 = arith.constant 0 : index
    %c0_13 = arith.constant 0 : index
    %18 = vector.load %arg7[%c0_12, %c0_13] : memref<32x64xbf16, #tpu.memory_space<vmem>>, vector<32x64xbf16>
    %cst_14 = arith.constant dense<0.000000e+00> : vector<264x64xf32>
    %19 = tpu.matmul %17, %18, %cst_14 {dimension_numbers = #tpu.dot_dimension_numbers<[1], [0], [0], [1], [0, 0, 1, 1], [], []>} : vector<264x32xbf16>, vector<32x64xbf16>, vector<264x64xf32> -> vector<264x64xf32>
    %c0_15 = arith.constant 0 : index
    %c0_16 = arith.constant 0 : index
    %20 = vector.load %arg8[%c0_15, %c0_16] : memref<1x64xf32, #tpu.memory_space<vmem>>, vector<1x64xf32>
    %21 = vector.broadcast %20 : vector<1x64xf32> to vector<264x64xf32>
    %22 = arith.addf %19, %21 : vector<264x64xf32>
    %23 = vector.extract_strided_slice %22 {offsets = [0, 0], sizes = [264, 32], strides = [1, 1]} : vector<264x64xf32> to vector<264x32xf32>
    %24 = vector.extract_strided_slice %22 {offsets = [0, 32], sizes = [264, 32], strides = [1, 1]} : vector<264x64xf32> to vector<264x32xf32>
    %25 = math.exp %24 : vector<264x32xf32>
    %cst_17 = arith.constant 5.000000e-01 : f32
    %26 = vector.broadcast %cst_17 : f32 to vector<264x32xf32>
    %27 = arith.mulf %26, %25 : vector<264x32xf32>
    %c0_18 = arith.constant 0 : index
    %c0_19 = arith.constant 0 : index
    %28 = vector.load %arg2[%c0_18, %c0_19] : memref<264x32xf32, #tpu.memory_space<vmem>>, vector<264x32xf32>
    %29 = arith.mulf %28, %27 : vector<264x32xf32>
    %30 = arith.addf %23, %29 : vector<264x32xf32>
    %cst_20 = arith.constant 0.000000e+00 : f32
    %31 = vector.broadcast %cst_20 : f32 to vector<264x32xf32>
    %32 = arith.maximumf %30, %31 : vector<264x32xf32>
    %33 = arith.truncf %32 : vector<264x32xf32> to vector<264x32xbf16>
    %c0_21 = arith.constant 0 : index
    %c0_22 = arith.constant 0 : index
    %34 = vector.load %arg9[%c0_21, %c0_22] : memref<32x64xbf16, #tpu.memory_space<vmem>>, vector<32x64xbf16>
    %cst_23 = arith.constant dense<0.000000e+00> : vector<264x64xf32>
    %35 = tpu.matmul %33, %34, %cst_23 {dimension_numbers = #tpu.dot_dimension_numbers<[1], [0], [0], [1], [0, 0, 1, 1], [], []>} : vector<264x32xbf16>, vector<32x64xbf16>, vector<264x64xf32> -> vector<264x64xf32>
    %c0_24 = arith.constant 0 : index
    %c0_25 = arith.constant 0 : index
    %36 = vector.load %arg10[%c0_24, %c0_25] : memref<1x64xf32, #tpu.memory_space<vmem>>, vector<1x64xf32>
    %37 = vector.broadcast %36 : vector<1x64xf32> to vector<264x64xf32>
    %38 = arith.addf %35, %37 : vector<264x64xf32>
    %cst_26 = arith.constant 0.000000e+00 : f32
    %39 = vector.broadcast %cst_26 : f32 to vector<264x64xf32>
    %40 = arith.maximumf %38, %39 : vector<264x64xf32>
    %41 = arith.truncf %40 : vector<264x64xf32> to vector<264x64xbf16>
    %c0_27 = arith.constant 0 : index
    %c0_28 = arith.constant 0 : index
    %42 = vector.load %arg11[%c0_27, %c0_28] : memref<64x64xbf16, #tpu.memory_space<vmem>>, vector<64x64xbf16>
    %cst_29 = arith.constant dense<0.000000e+00> : vector<264x64xf32>
    %43 = tpu.matmul %41, %42, %cst_29 {dimension_numbers = #tpu.dot_dimension_numbers<[1], [0], [0], [1], [0, 0, 1, 1], [], []>} : vector<264x64xbf16>, vector<64x64xbf16>, vector<264x64xf32> -> vector<264x64xf32>
    %c0_30 = arith.constant 0 : index
    %c0_31 = arith.constant 0 : index
    %44 = vector.load %arg12[%c0_30, %c0_31] : memref<1x64xf32, #tpu.memory_space<vmem>>, vector<1x64xf32>
    %45 = vector.broadcast %44 : vector<1x64xf32> to vector<264x64xf32>
    %46 = arith.addf %43, %45 : vector<264x64xf32>
    %47 = tpu.concatenate %46, %23, %27 in 1 : vector<264x64xf32>, vector<264x32xf32>, vector<264x32xf32> -> vector<264x128xf32>
    %48 = arith.truncf %47 : vector<264x128xf32> to vector<264x128xbf16>
    %c0_32 = arith.constant 0 : index
    %c0_33 = arith.constant 0 : index
    %49 = vector.load %arg13[%c0_32, %c0_33] : memref<264x128xbf16, #tpu.memory_space<vmem>>, vector<264x128xbf16>
    tpu.vector_store %arg13[%c0_32, %c0_33], %48 {strides = array<i32>} : memref<264x128xbf16, #tpu.memory_space<vmem>>, vector<264x128xbf16>,
    return
  }
  func.func @transform_0(%arg0: i32) -> (i32, i32) {
    %c0_i32 = arith.constant 0 : i32
    %c0_i32_0 = arith.constant 0 : i32
    return %arg0, %c0_i32 : i32, i32
  }
  func.func @transform_1(%arg0: i32) -> (i32, i32) {
    %c0_i32 = arith.constant 0 : i32
    %c0_i32_0 = arith.constant 0 : i32
    return %arg0, %c0_i32 : i32, i32
  }
  func.func @transform_2(%arg0: i32) -> (i32, i32) {
    %c0_i32 = arith.constant 0 : i32
    %c0_i32_0 = arith.constant 0 : i32
    %c0_i32_1 = arith.constant 0 : i32
    return %c0_i32, %c0_i32_0 : i32, i32
  }
  func.func @transform_3(%arg0: i32) -> (i32, i32) {
    %c0_i32 = arith.constant 0 : i32
    %c0_i32_0 = arith.constant 0 : i32
    %c0_i32_1 = arith.constant 0 : i32
    return %c0_i32, %c0_i32_0 : i32, i32
  }
  func.func @transform_4(%arg0: i32) -> (i32, i32) {
    %c0_i32 = arith.constant 0 : i32
    %c0_i32_0 = arith.constant 0 : i32
    %c0_i32_1 = arith.constant 0 : i32
    return %c0_i32, %c0_i32_0 : i32, i32
  }
  func.func @transform_5(%arg0: i32) -> (i32, i32) {
    %c0_i32 = arith.constant 0 : i32
    %c0_i32_0 = arith.constant 0 : i32
    %c0_i32_1 = arith.constant 0 : i32
    return %c0_i32, %c0_i32_0 : i32, i32
  }
  func.func @transform_6(%arg0: i32) -> (i32, i32) {
    %c0_i32 = arith.constant 0 : i32
    %c0_i32_0 = arith.constant 0 : i32
    %c0_i32_1 = arith.constant 0 : i32
    return %c0_i32, %c0_i32_0 : i32, i32
  }
  func.func @transform_7(%arg0: i32) -> (i32, i32) {
    %c0_i32 = arith.constant 0 : i32
    %c0_i32_0 = arith.constant 0 : i32
    %c0_i32_1 = arith.constant 0 : i32
    return %c0_i32, %c0_i32_0 : i32, i32
  }
  func.func @transform_8(%arg0: i32) -> (i32, i32) {
    %c0_i32 = arith.constant 0 : i32
    %c0_i32_0 = arith.constant 0 : i32
    %c0_i32_1 = arith.constant 0 : i32
    return %c0_i32, %c0_i32_0 : i32, i32
  }
  func.func @transform_9(%arg0: i32) -> (i32, i32) {
    %c0_i32 = arith.constant 0 : i32
    %c0_i32_0 = arith.constant 0 : i32
    %c0_i32_1 = arith.constant 0 : i32
    return %c0_i32, %c0_i32_0 : i32, i32
  }
  func.func @transform_10(%arg0: i32) -> (i32, i32) {
    %c0_i32 = arith.constant 0 : i32
    %c0_i32_0 = arith.constant 0 : i32
    %c0_i32_1 = arith.constant 0 : i32
    return %c0_i32, %c0_i32_0 : i32, i32
  }
  func.func @transform_11(%arg0: i32) -> (i32, i32) {
    %c0_i32 = arith.constant 0 : i32
    %c0_i32_0 = arith.constant 0 : i32
    %c0_i32_1 = arith.constant 0 : i32
    return %c0_i32, %c0_i32_0 : i32, i32
  }
  func.func @transform_12(%arg0: i32) -> (i32, i32) {
    %c0_i32 = arith.constant 0 : i32
    %c0_i32_0 = arith.constant 0 : i32
    return %arg0, %c0_i32 : i32, i32
  }
}

</mosaic_0001>

<llo_original>
// kernel: tpu_custom_call.1
$region0: #{tpu_custom_call.1}
  #allocation0 [shape = 'u32[]', space=smem, size = 0x4, offset = 0x4, fixed_abs, tag = 'smem constant byte address 0x4 - core index']
  #allocation1 [shape = 'u32[144,128]{1,0:T(1,128)}', space=vmem, size = 0x12000, scoped, tag = 'internal scratch']
  %s0 = inlined_call_operand.vmem [shape: f32[264,64], index: 0, kind: input, shape index: {}]
  %s1 = inlined_call_operand.vmem [shape: f32[264,32], index: 1, kind: input, shape index: {}]
  %s2 = inlined_call_operand.vmem [shape: bf16[64,64], index: 2, kind: input, shape index: {}]
  %s3 = inlined_call_operand.vmem [shape: f32[1,64], index: 3, kind: input, shape index: {}]
  %s4 = inlined_call_operand.vmem [shape: bf16[64,32], index: 4, kind: input, shape index: {}]
  %s5 = inlined_call_operand.vmem [shape: f32[1,32], index: 5, kind: input, shape index: {}]
  %s6 = inlined_call_operand.vmem [shape: bf16[32,64], index: 6, kind: input, shape index: {}]
  %s7 = inlined_call_operand.vmem [shape: f32[1,64], index: 7, kind: input, shape index: {}]
  %s8 = inlined_call_operand.vmem [shape: bf16[32,64], index: 8, kind: input, shape index: {}]
  %s9 = inlined_call_operand.vmem [shape: f32[1,64], index: 9, kind: input, shape index: {}]
  %s10 = inlined_call_operand.vmem [shape: bf16[64,64], index: 10, kind: input, shape index: {}]
  %s11 = inlined_call_operand.vmem [shape: f32[1,64], index: 11, kind: input, shape index: {}]
  %s12 = inlined_call_operand.hbm [shape: bf16[264,128], index: 12, kind: output, shape index: {}]
  %s13 = sld [smem:[#allocation0]]
  $region58: #{tpu_custom_call.1} parent=0
    _
  %s15 = ssub.s32 1, %s13
  %s16 = scalar_select 0, %s15, %s13
  $region1: #{tpu_custom_call.1} parent=0
    #allocation2 [shape = 'u8[67584]{0}', space=vmem, size = 0x10800, scoped, tag = 'output window, operand 0, single buffered']
    #allocation3 [shape = 's32[1]{0}', space=sflag, size = 0x4, scoped, tag = 'scoped memory for tpu_custom_call.1']
    %17 = vsyncpa [#allocation3], 0
    // Predicated region
    $region2: #{tpu_custom_call.1} parent=1 // pred_check
      _
    $region3: #{tpu_custom_call.1} parent=1 // pred_check_branch
      %19 = sbr.rel (0) target = $region5
    $region4: #{tpu_custom_call.1} parent=1 // pred_region
      _
    $region5: #{tpu_custom_call.1} parent=1 // pred_fallthru
      _
    // Predicated region
    $region6: #{tpu_custom_call.1} parent=1 // pred_check
      _
    $region7: #{tpu_custom_call.1} parent=1 // pred_check_branch
      %21 = sbr.rel (0) target = $region9
    $region8: #{tpu_custom_call.1} parent=1 // pred_region
      _
    $region9: #{tpu_custom_call.1} parent=1 // pred_fallthru
      _
    // Predicated region
    $region10: #{tpu_custom_call.1} parent=1 // pred_check
      _
    $region11: #{tpu_custom_call.1} parent=1 // pred_check_branch
      %23 = sbr.rel (0) target = $region13
    $region12: #{tpu_custom_call.1} parent=1 // pred_region
      _
    $region13: #{tpu_custom_call.1} parent=1 // pred_fallthru
      _
    // Predicated region
    $region14: #{tpu_custom_call.1} parent=1 // pred_check
      _
    $region15: #{tpu_custom_call.1} parent=1 // pred_check_branch
      %25 = sbr.rel (0) target = $region17
    $region16: #{tpu_custom_call.1} parent=1 // pred_region
      _
    $region17: #{tpu_custom_call.1} parent=1 // pred_fallthru
      _
    // Predicated region
    $region18: #{tpu_custom_call.1} parent=1 // pred_check
      _
    $region19: #{tpu_custom_call.1} parent=1 // pred_check_branch
      %27 = sbr.rel (0) target = $region21
    $region20: #{tpu_custom_call.1} parent=1 // pred_region
      _
    $region21: #{tpu_custom_call.1} parent=1 // pred_fallthru
      _
    // Predicated region
    $region22: #{tpu_custom_call.1} parent=1 // pred_check
      _
    $region23: #{tpu_custom_call.1} parent=1 // pred_check_branch
      %29 = sbr.rel (0) target = $region25
    $region24: #{tpu_custom_call.1} parent=1 // pred_region
      _
    $region25: #{tpu_custom_call.1} parent=1 // pred_fallthru
      _
    // Predicated region
    $region26: #{tpu_custom_call.1} parent=1 // pred_check
      _
    $region27: #{tpu_custom_call.1} parent=1 // pred_check_branch
      %31 = sbr.rel (0) target = $region29
    $region28: #{tpu_custom_call.1} parent=1 // pred_region
      _
    $region29: #{tpu_custom_call.1} parent=1 // pred_fallthru
      _
    // Predicated region
    $region30: #{tpu_custom_call.1} parent=1 // pred_check
      _
    $region31: #{tpu_custom_call.1} parent=1 // pred_check_branch
      %33 = sbr.rel (0) target = $region33
    $region32: #{tpu_custom_call.1} parent=1 // pred_region
      _
    $region33: #{tpu_custom_call.1} parent=1 // pred_fallthru
      _
    // Predicated region
    $region34: #{tpu_custom_call.1} parent=1 // pred_check
      _
    $region35: #{tpu_custom_call.1} parent=1 // pred_check_branch
      %35 = sbr.rel (0) target = $region37
    $region36: #{tpu_custom_call.1} parent=1 // pred_region
      _
    $region37: #{tpu_custom_call.1} parent=1 // pred_fallthru
      _
    // Predicated region
    $region38: #{tpu_custom_call.1} parent=1 // pred_check
      _
    $region39: #{tpu_custom_call.1} parent=1 // pred_check_branch
      %37 = sbr.rel (0) target = $region41
    $region40: #{tpu_custom_call.1} parent=1 // pred_region
      _
    $region41: #{tpu_custom_call.1} parent=1 // pred_fallthru
      _
    // Predicated region
    $region42: #{tpu_custom_call.1} parent=1 // pred_check
      _
    $region43: #{tpu_custom_call.1} parent=1 // pred_check_branch
      %39 = sbr.rel (0) target = $region45
    $region44: #{tpu_custom_call.1} parent=1 // pred_region
      _
    $region45: #{tpu_custom_call.1} parent=1 // pred_fallthru
      _
    // Predicated region
    $region46: #{tpu_custom_call.1} parent=1 // pred_check
      _
    $region47: #{tpu_custom_call.1} parent=1 // pred_check_branch
      %41 = sbr.rel (0) target = $region49
    $region48: #{tpu_custom_call.1} parent=1 // pred_region
      _
    $region49: #{tpu_custom_call.1} parent=1 // pred_fallthru
      _
    %v43 = vld [vmem:[%s0] sm:$0xff]
    %v44 = vld [vmem:[%s0 + $0x8] sm:$0xff]
    %v45 = vld [vmem:[%s0 + $0x10] sm:$0xff]
    %v46 = vld [vmem:[%s0 + $0x18] sm:$0xff]
    %v47 = vld [vmem:[%s0 + $0x20] sm:$0xff]
    %v48 = vld [vmem:[%s0 + $0x28] sm:$0xff]
    %v49 = vld [vmem:[%s0 + $0x30] sm:$0xff]
    %v50 = vld [vmem:[%s0 + $0x38] sm:$0xff]
    %v51 = vld [vmem:[%s0 + $0x40] sm:$0xff]
    %v52 = vld [vmem:[%s0 + $0x48] sm:$0xff]
    %v53 = vld [vmem:[%s0 + $0x50] sm:$0xff]
    %v54 = vld [vmem:[%s0 + $0x58] sm:$0xff]
    %v55 = vld [vmem:[%s0 + $0x60] sm:$0xff]
    %v56 = vld [vmem:[%s0 + $0x68] sm:$0xff]
    %v57 = vld [vmem:[%s0 + $0x70] sm:$0xff]
    %v58 = vld [vmem:[%s0 + $0x78] sm:$0xff]
    %v59 = vld [vmem:[%s0 + $0x80] sm:$0xff]
    %v60 = vld [vmem:[%s0 + $0x88] sm:$0xff]
    %v61 = vld [vmem:[%s0 + $0x90] sm:$0xff]
    %v62 = vld [vmem:[%s0 + $0x98] sm:$0xff]
    %v63 = vld [vmem:[%s0 + $0xa0] sm:$0xff]
    %v64 = vld [vmem:[%s0 + $0xa8] sm:$0xff]
    %v65 = vld [vmem:[%s0 + $0xb0] sm:$0xff]
    %v66 = vld [vmem:[%s0 + $0xb8] sm:$0xff]
    %v67 = vld [vmem:[%s0 + $0xc0] sm:$0xff]
    %v68 = vld [vmem:[%s0 + $0xc8] sm:$0xff]
    %v69 = vld [vmem:[%s0 + $0xd0] sm:$0xff]
    %v70 = vld [vmem:[%s0 + $0xd8] sm:$0xff]
    %v71 = vld [vmem:[%s0 + $0xe0] sm:$0xff]
    %v72 = vld [vmem:[%s0 + $0xe8] sm:$0xff]
    %v73 = vld [vmem:[%s0 + $0xf0] sm:$0xff]
    %v74 = vld [vmem:[%s0 + $0xf8] sm:$0xff]
    %v75 = vld [vmem:[%s0 + $0x100] sm:$0xff]
    %v76 = vpack.c.bf16 %v44, %v43
    %v77 = vpack.c.bf16 %v46, %v45
    %v78 = vpack.c.bf16 %v48, %v47
    %v79 = vpack.c.bf16 %v50, %v49
    %v80 = vpack.c.bf16 %v52, %v51
    %v81 = vpack.c.bf16 %v54, %v53
    %v82 = vpack.c.bf16 %v56, %v55
    %v83 = vpack.c.bf16 %v58, %v57
    %v84 = vpack.c.bf16 %v60, %v59
    %v85 = vpack.c.bf16 %v62, %v61
    %v86 = vpack.c.bf16 %v64, %v63
    %v87 = vpack.c.bf16 %v66, %v65
    %v88 = vpack.c.bf16 %v68, %v67
    %v89 = vpack.c.bf16 %v70, %v69
    %v90 = vpack.c.bf16 %v72, %v71
    %v91 = vpack.c.bf16 %v74, %v73
    %v92 = vpack.c.bf16 %v75, %v75
    %v93 = vld [vmem:[%s2] sm:$0xf]
    %v94 = vld [vmem:[%s2 + $0x4] sm:$0xf]
    %v95 = vld [vmem:[%s2 + $0x8] sm:$0xf]
    %v96 = vld [vmem:[%s2 + $0xc] sm:$0xf]
    %v97 = vld [vmem:[%s2 + $0x10] sm:$0xf]
    %v98 = vld [vmem:[%s2 + $0x14] sm:$0xf]
    %v99 = vld [vmem:[%s2 + $0x18] sm:$0xf]
    %v100 = vld [vmem:[%s2 + $0x1c] sm:$0xf]
    %v101 = vld [vmem:[%s3] sm:$0x1]
    %v103 = vlaneseq
    %v104 = vshrl.u32 %v103, 7
    %v105 = vsub.s32 0, %v104
    %v106 = vrot.slane %v101, %v105
    %v116 = vunpack.c.l.b16 %v93
    %v117 = vunpack.c.l.b16 %v94
    %v118 = vunpack.c.l.b16 %v95
    %v119 = vunpack.c.l.b16 %v96
    %v120 = vunpack.c.l.b16 %v97
    %v121 = vunpack.c.l.b16 %v98
    %v122 = vunpack.c.l.b16 %v99
    %v123 = vunpack.c.l.b16 %v100
    %v124 = vpack.c.b16 %v117, %v116
    %v125 = vpack.c.b16 %v119, %v118
    %v126 = vpack.c.b16 %v121, %v120
    %v127 = vpack.c.b16 %v123, %v122
    %vm132 = vcmask 523264
    %v134 = vsel %vm132, %v76, 0
    %v137 = vsel %vm132, %v77, 0
    %v140 = vsel %vm132, %v78, 0
    %v143 = vsel %vm132, %v79, 0
    %v146 = vsel %vm132, %v80, 0
    %v149 = vsel %vm132, %v81, 0
    %v152 = vsel %vm132, %v82, 0
    %v155 = vsel %vm132, %v83, 0
    %v158 = vsel %vm132, %v84, 0
    %v161 = vsel %vm132, %v85, 0
    %v164 = vsel %vm132, %v86, 0
    %v167 = vsel %vm132, %v87, 0
    %v170 = vsel %vm132, %v88, 0
    %v173 = vsel %vm132, %v89, 0
    %v176 = vsel %vm132, %v90, 0
    %v179 = vsel %vm132, %v91, 0
    %v182 = vsel %vm132, %v92, 0
    %184 = vmatprep.subr.bf16.mxu0 0
    %185 = vmatpush1.bf16.msra.mxu0 %v124
    %186 = vmatprep.subr.bf16.mxu0 0
    %187 = vmatpush1.bf16.msra.mxu0 %v125
    %188 = vmatprep.subr.bf16.mxu0 0
    %189 = vmatpush1.bf16.msra.mxu0 %v126
    %190 = vmatprep.subr.bf16.mxu0 0
    %191 = vmatpush1.bf16.msra.mxu0 %v127
    %192 = vmatprep.subr.bf16.mxu0 0
    %193 = vmatpush1.bf16.msra.mxu0 0
    %194 = vmatprep.subr.bf16.mxu0 0
    %195 = vmatpush1.bf16.msra.mxu0 0
    %196 = vmatprep.subr.bf16.mxu0 0
    %197 = vmatpush1.bf16.msra.mxu0 0
    %198 = vmatprep.subr.bf16.mxu0 0
    %199 = vmatpush1.bf16.msra.mxu0 0
    %200 = vmatprep.subr.bf16.mxu0 0
    %201 = vmatpush1.bf16.msra.mxu0 0
    %202 = vmatprep.subr.bf16.mxu0 0
    %203 = vmatpush1.bf16.msra.mxu0 0
    %204 = vmatprep.subr.bf16.mxu0 0
    %205 = vmatpush1.bf16.msra.mxu0 0
    %206 = vmatprep.subr.bf16.mxu0 0
    %207 = vmatpush1.bf16.msra.mxu0 0
    %208 = vmatprep.subr.bf16.mxu0 0
    %209 = vmatpush1.bf16.msra.mxu0 0
    %210 = vmatprep.subr.bf16.mxu0 0
    %211 = vmatpush1.bf16.msra.mxu0 0
    %212 = vmatprep.subr.bf16.mxu0 0
    %213 = vmatpush1.bf16.msra.mxu0 0
    %214 = vmatprep.subr.bf16.mxu0 0
    %215 = vmatpush1.bf16.msra.mxu0 0
    %216 = vmatprep.mubr.bf16.mxu0 0
    %217 = vmatmul.mubr.bf16.gmra.mrb[0].mxu0 %v134
    %v218 = vpop.f32.mrb[0].mxu0
    %v219 = vadd.f32 %v106, %v218
    %v220 = vpop.f32.mrb[0].mxu0
    %v221 = vpop.f32.mrb[0].mxu0
    %v222 = vadd.f32 %v106, %v221
    %v223 = vpop.f32.mrb[0].mxu0
    %224 = vmatprep.mubr.bf16.mxu0 0
    %225 = vmatmul.mubr.bf16.gmra.mrb[0].mxu0 %v137
    %v226 = vpop.f32.mrb[0].mxu0
    %v227 = vadd.f32 %v106, %v226
    %v228 = vpop.f32.mrb[0].mxu0
    %v229 = vpop.f32.mrb[0].mxu0
    %v230 = vadd.f32 %v106, %v229
    %v231 = vpop.f32.mrb[0].mxu0
    %232 = vmatprep.mubr.bf16.mxu0 0
    %233 = vmatmul.mubr.bf16.gmra.mrb[0].mxu0 %v140
    %v234 = vpop.f32.mrb[0].mxu0
    %v235 = vadd.f32 %v106, %v234
    %v236 = vpop.f32.mrb[0].mxu0
    %v237 = vpop.f32.mrb[0].mxu0
    %v238 = vadd.f32 %v106, %v237
    %v239 = vpop.f32.mrb[0].mxu0
    %240 = vmatprep.mubr.bf16.mxu0 0
    %241 = vmatmul.mubr.bf16.gmra.mrb[0].mxu0 %v143
    %v242 = vpop.f32.mrb[0].mxu0
    %v243 = vadd.f32 %v106, %v242
    %v244 = vpop.f32.mrb[0].mxu0
    %v245 = vpop.f32.mrb[0].mxu0
    %v246 = vadd.f32 %v106, %v245
    %v247 = vpop.f32.mrb[0].mxu0
    %248 = vmatprep.mubr.bf16.mxu0 0
    %249 = vmatmul.mubr.bf16.gmra.mrb[0].mxu0 %v146
    %v250 = vpop.f32.mrb[0].mxu0
    %v251 = vadd.f32 %v106, %v250
    %v252 = vpop.f32.mrb[0].mxu0
    %v253 = vpop.f32.mrb[0].mxu0
    %v254 = vadd.f32 %v106, %v253
    %v255 = vpop.f32.mrb[0].mxu0
    %256 = vmatprep.mubr.bf16.mxu0 0
    %257 = vmatmul.mubr.bf16.gmra.mrb[0].mxu0 %v149
    %v258 = vpop.f32.mrb[0].mxu0
    %v259 = vadd.f32 %v106, %v258
    %v260 = vpop.f32.mrb[0].mxu0
    %v261 = vpop.f32.mrb[0].mxu0
    %v262 = vadd.f32 %v106, %v261
    %v263 = vpop.f32.mrb[0].mxu0
    %264 = vmatprep.mubr.bf16.mxu0 0
    %265 = vmatmul.mubr.bf16.gmra.mrb[0].mxu0 %v152
    %v266 = vpop.f32.mrb[0].mxu0
    %v267 = vadd.f32 %v106, %v266
    %v268 = vpop.f32.mrb[0].mxu0
    %v269 = vpop.f32.mrb[0].mxu0
    %v270 = vadd.f32 %v106, %v269
    %v271 = vpop.f32.mrb[0].mxu0
    %272 = vmatprep.mubr.bf16.mxu0 0
    %273 = vmatmul.mubr.bf16.gmra.mrb[0].mxu0 %v155
    %v274 = vpop.f32.mrb[0].mxu0
    %v275 = vadd.f32 %v106, %v274
    %v276 = vpop.f32.mrb[0].mxu0
    %v277 = vpop.f32.mrb[0].mxu0
    %v278 = vadd.f32 %v106, %v277
    %v279 = vpop.f32.mrb[0].mxu0
    %280 = vmatprep.mubr.bf16.mxu0 0
    %281 = vmatmul.mubr.bf16.gmra.mrb[0].mxu0 %v158
    %v282 = vpop.f32.mrb[0].mxu0
    %v283 = vadd.f32 %v106, %v282
    %v284 = vpop.f32.mrb[0].mxu0
    %v285 = vpop.f32.mrb[0].mxu0
    %v286 = vadd.f32 %v106, %v285
    %v287 = vpop.f32.mrb[0].mxu0
    %288 = vmatprep.mubr.bf16.mxu0 0
    %289 = vmatmul.mubr.bf16.gmra.mrb[0].mxu0 %v161
    %v290 = vpop.f32.mrb[0].mxu0
    %v291 = vadd.f32 %v106, %v290
    %v292 = vpop.f32.mrb[0].mxu0
    %v293 = vpop.f32.mrb[0].mxu0
    %v294 = vadd.f32 %v106, %v293
    %v295 = vpop.f32.mrb[0].mxu0
    %296 = vmatprep.mubr.bf16.mxu0 0
    %297 = vmatmul.mubr.bf16.gmra.mrb[0].mxu0 %v164
    %v298 = vpop.f32.mrb[0].mxu0
    %v299 = vadd.f32 %v106, %v298
    %v300 = vpop.f32.mrb[0].mxu0
    %v301 = vpop.f32.mrb[0].mxu0
    %v302 = vadd.f32 %v106, %v301
    %v303 = vpop.f32.mrb[0].mxu0
    %304 = vmatprep.mubr.bf16.mxu0 0
    %305 = vmatmul.mubr.bf16.gmra.mrb[0].mxu0 %v167
    %v306 = vpop.f32.mrb[0].mxu0
    %v307 = vadd.f32 %v106, %v306
    %v308 = vpop.f32.mrb[0].mxu0
    %v309 = vpop.f32.mrb[0].mxu0
    %v310 = vadd.f32 %v106, %v309
    %v311 = vpop.f32.mrb[0].mxu0
    %312 = vmatprep.mubr.bf16.mxu0 0
    %313 = vmatmul.mubr.bf16.gmra.mrb[0].mxu0 %v170
    %v314 = vpop.f32.mrb[0].mxu0
    %v315 = vadd.f32 %v106, %v314
    %v316 = vpop.f32.mrb[0].mxu0
    %v317 = vpop.f32.mrb[0].mxu0
    %v318 = vadd.f32 %v106, %v317
    %v319 = vpop.f32.mrb[0].mxu0
    %320 = vmatprep.mubr.bf16.mxu0 0
    %321 = vmatmul.mubr.bf16.gmra.mrb[0].mxu0 %v173
    %v322 = vpop.f32.mrb[0].mxu0
    %v323 = vadd.f32 %v106, %v322
    %v324 = vpop.f32.mrb[0].mxu0
    %v325 = vpop.f32.mrb[0].mxu0
    %v326 = vadd.f32 %v106, %v325
    %v327 = vpop.f32.mrb[0].mxu0
    %328 = vmatprep.mubr.bf16.mxu0 0
    %329 = vmatmul.mubr.bf16.gmra.mrb[0].mxu0 %v176
    %v330 = vpop.f32.mrb[0].mxu0
    %v331 = vadd.f32 %v106, %v330
    %v332 = vpop.f32.mrb[0].mxu0
    %v333 = vpop.f32.mrb[0].mxu0
    %v334 = vadd.f32 %v106, %v333
    %v335 = vpop.f32.mrb[0].mxu0
    %336 = vmatprep.mubr.bf16.mxu0 0
    %337 = vmatmul.mubr.bf16.gmra.mrb[0].mxu0 %v179
    %v338 = vpop.f32.mrb[0].mxu0
    %v339 = vadd.f32 %v106, %v338
    %v340 = vpop.f32.mrb[0].mxu0
    %v341 = vpop.f32.mrb[0].mxu0
    %v342 = vadd.f32 %v106, %v341
    %v343 = vpop.f32.mrb[0].mxu0
    %344 = vmatprep.mubr.bf16.mxu0 0
    %345 = vmatmul.mubr.bf16.gmra.mrb[0].mxu0 %v182
    %v346 = vpop.f32.mrb[0].mxu0
    %v347 = vadd.f32 %v106, %v346
    %v348 = vpop.f32.mrb[0].mxu0
    %v349 = vpop.f32.mrb[0].mxu0
    %v350 = vpop.f32.mrb[0].mxu0
    %351 = vdwg.mxu0
    %v352 = vmax.f32 %v219, 0.0
    %v353 = vmax.f32 %v222, 0.0
    %v354 = vmax.f32 %v227, 0.0
    %v355 = vmax.f32 %v230, 0.0
    %v356 = vmax.f32 %v235, 0.0
    %v357 = vmax.f32 %v238, 0.0
    %v358 = vmax.f32 %v243, 0.0
    %v359 = vmax.f32 %v246, 0.0
    %v360 = vmax.f32 %v251, 0.0
    %v361 = vmax.f32 %v254, 0.0
    %v362 = vmax.f32 %v259, 0.0
    %v363 = vmax.f32 %v262, 0.0
    %v364 = vmax.f32 %v267, 0.0
    %v365 = vmax.f32 %v270, 0.0
    %v366 = vmax.f32 %v275, 0.0
    %v367 = vmax.f32 %v278, 0.0
    %v368 = vmax.f32 %v283, 0.0
    %v369 = vmax.f32 %v286, 0.0
    %v370 = vmax.f32 %v291, 0.0
    %v371 = vmax.f32 %v294, 0.0
    %v372 = vmax.f32 %v299, 0.0
    %v373 = vmax.f32 %v302, 0.0
    %v374 = vmax.f32 %v307, 0.0
    %v375 = vmax.f32 %v310, 0.0
    %v376 = vmax.f32 %v315, 0.0
    %v377 = vmax.f32 %v318, 0.0
    %v378 = vmax.f32 %v323, 0.0
    %v379 = vmax.f32 %v326, 0.0
    %v380 = vmax.f32 %v331, 0.0
    %v381 = vmax.f32 %v334, 0.0
    %v382 = vmax.f32 %v339, 0.0
    %v383 = vmax.f32 %v342, 0.0
    %v384 = vmax.f32 %v347, 0.0
    %v385 = vpack.c.bf16 %v353, %v352
    %v386 = vpack.c.bf16 %v355, %v354
    %v387 = vpack.c.bf16 %v357, %v356
    %v388 = vpack.c.bf16 %v359, %v358
    %v389 = vpack.c.bf16 %v361, %v360
    %v390 = vpack.c.bf16 %v363, %v362
    %v391 = vpack.c.bf16 %v365, %v364
    %v392 = vpack.c.bf16 %v367, %v366
    %v393 = vpack.c.bf16 %v369, %v368
    %v394 = vpack.c.bf16 %v371, %v370
    %v395 = vpack.c.bf16 %v373, %v372
    %v396 = vpack.c.bf16 %v375, %v374
    %v397 = vpack.c.bf16 %v377, %v376
    %v398 = vpack.c.bf16 %v379, %v378
    %v399 = vpack.c.bf16 %v381, %v380
    %v400 = vpack.c.bf16 %v383, %v382
    %v401 = vpack.c.bf16 %v384, %v384
    %v402 = vld [vmem:[%s4] sm:$0xf]
    %v403 = vld [vmem:[%s4 + $0x4] sm:$0xf]
    %v404 = vld [vmem:[%s4 + $0x8] sm:$0xf]
    %v405 = vld [vmem:[%s4 + $0xc] sm:$0xf]
    %v406 = vld [vmem:[%s4 + $0x10] sm:$0xf]
    %v407 = vld [vmem:[%s4 + $0x14] sm:$0xf]
    %v408 = vld [vmem:[%s4 + $0x18] sm:$0xf]
    %v409 = vld [vmem:[%s4 + $0x1c] sm:$0xf]
    %v410 = vld [vmem:[%s5] sm:$0x1]
    %v412 = vlaneseq
    %v413 = vshrl.u32 %v412, 7
    %v414 = vsub.s32 0, %v413
    %v415 = vrot.slane %v410, %v414
    %v425 = vunpack.c.l.b16 %v402
    %v426 = vunpack.c.l.b16 %v403
    %v427 = vunpack.c.l.b16 %v404
    %v428 = vunpack.c.l.b16 %v405
    %v429 = vunpack.c.l.b16 %v406
    %v430 = vunpack.c.l.b16 %v407
    %v431 = vunpack.c.l.b16 %v408
    %v432 = vunpack.c.l.b16 %v409
    %v433 = vpack.c.b16 %v426, %v425
    %v434 = vpack.c.b16 %v428, %v427
    %v435 = vpack.c.b16 %v430, %v429
    %v436 = vpack.c.b16 %v432, %v431
    %v442 = vsel %vm132, %v385, 0
    %v445 = vsel %vm132, %v386, 0
    %v448 = vsel %vm132, %v387, 0
    %v451 = vsel %vm132, %v388, 0
    %v454 = vsel %vm132, %v389, 0
    %v457 = vsel %vm132, %v390, 0
    %v460 = vsel %vm132, %v391, 0
    %v463 = vsel %vm132, %v392, 0
    %v466 = vsel %vm132, %v393, 0
    %v469 = vsel %vm132, %v394, 0
    %v472 = vsel %vm132, %v395, 0
    %v475 = vsel %vm132, %v396, 0
    %v478 = vsel %vm132, %v397, 0
    %v481 = vsel %vm132, %v398, 0
    %v484 = vsel %vm132, %v399, 0
    %v487 = vsel %vm132, %v400, 0
    %v490 = vsel %vm132, %v401, 0
    %492 = vmatprep.subr.bf16.mxu0 0
    %493 = vmatpush1.bf16.msra.mxu0 %v433
    %494 = vmatprep.subr.bf16.mxu0 0
    %495 = vmatpush1.bf16.msra.mxu0 %v434
    %496 = vmatprep.subr.bf16.mxu0 0
    %497 = vmatpush1.bf16.msra.mxu0 %v435
    %498 = vmatprep.subr.bf16.mxu0 0
    %499 = vmatpush1.bf16.msra.mxu0 %v436
    %500 = vmatprep.subr.bf16.mxu0 0
    %501 = vmatpush1.bf16.msra.mxu0 0
    %502 = vmatprep.subr.bf16.mxu0 0
    %503 = vmatpush1.bf16.msra.mxu0 0
    %504 = vmatprep.subr.bf16.mxu0 0
    %505 = vmatpush1.bf16.msra.mxu0 0
    %506 = vmatprep.subr.bf16.mxu0 0
    %507 = vmatpush1.bf16.msra.mxu0 0
    %508 = vmatprep.subr.bf16.mxu0 0
    %509 = vmatpush1.bf16.msra.mxu0 0
    %510 = vmatprep.subr.bf16.mxu0 0
    %511 = vmatpush1.bf16.msra.mxu0 0
    %512 = vmatprep.subr.bf16.mxu0 0
    %513 = vmatpush1.bf16.msra.mxu0 0
    %514 = vmatprep.subr.bf16.mxu0 0
    %515 = vmatpush1.bf16.msra.mxu0 0
    %516 = vmatprep.subr.bf16.mxu0 0
    %517 = vmatpush1.bf16.msra.mxu0 0
    %518 = vmatprep.subr.bf16.mxu0 0
    %519 = vmatpush1.bf16.msra.mxu0 0
    %520 = vmatprep.subr.bf16.mxu0 0
    %521 = vmatpush1.bf16.msra.mxu0 0
    %522 = vmatprep.subr.bf16.mxu0 0
    %523 = vmatpush1.bf16.msra.mxu0 0
    %524 = vmatprep.mubr.bf16.mxu0 0
    %525 = vmatmul.mubr.bf16.gmra.mrb[0].mxu0 %v442
    %v526 = vpop.f32.mrb[0].mxu0
    %v527 = vadd.f32 %v415, %v526
    %v528 = vpop.f32.mrb[0].mxu0
    %v529 = vpop.f32.mrb[0].mxu0
    %v530 = vadd.f32 %v415, %v529
    %v531 = vpop.f32.mrb[0].mxu0
    %532 = vmatprep.mubr.bf16.mxu0 0
    %533 = vmatmul.mubr.bf16.gmra.mrb[0].mxu0 %v445
    %v534 = vpop.f32.mrb[0].mxu0
    %v535 = vadd.f32 %v415, %v534
    %v536 = vpop.f32.mrb[0].mxu0
    %v537 = vpop.f32.mrb[0].mxu0
    %v538 = vadd.f32 %v415, %v537
    %v539 = vpop.f32.mrb[0].mxu0
    %540 = vmatprep.mubr.bf16.mxu0 0
    %541 = vmatmul.mubr.bf16.gmra.mrb[0].mxu0 %v448
    %v542 = vpop.f32.mrb[0].mxu0
    %v543 = vadd.f32 %v415, %v542
    %v544 = vpop.f32.mrb[0].mxu0
    %v545 = vpop.f32.mrb[0].mxu0
    %v546 = vadd.f32 %v415, %v545
    %v547 = vpop.f32.mrb[0].mxu0
    %548 = vmatprep.mubr.bf16.mxu0 0
    %549 = vmatmul.mubr.bf16.gmra.mrb[0].mxu0 %v451
    %v550 = vpop.f32.mrb[0].mxu0
    %v551 = vadd.f32 %v415, %v550
    %v552 = vpop.f32.mrb[0].mxu0
    %v553 = vpop.f32.mrb[0].mxu0
    %v554 = vadd.f32 %v415, %v553
    %v555 = vpop.f32.mrb[0].mxu0
    %556 = vmatprep.mubr.bf16.mxu0 0
    %557 = vmatmul.mubr.bf16.gmra.mrb[0].mxu0 %v454
    %v558 = vpop.f32.mrb[0].mxu0
    %v559 = vadd.f32 %v415, %v558
    %v560 = vpop.f32.mrb[0].mxu0
    %v561 = vpop.f32.mrb[0].mxu0
    %v562 = vadd.f32 %v415, %v561
    %v563 = vpop.f32.mrb[0].mxu0
    %564 = vmatprep.mubr.bf16.mxu0 0
    %565 = vmatmul.mubr.bf16.gmra.mrb[0].mxu0 %v457
    %v566 = vpop.f32.mrb[0].mxu0
    %v567 = vadd.f32 %v415, %v566
    %v568 = vpop.f32.mrb[0].mxu0
    %v569 = vpop.f32.mrb[0].mxu0
    %v570 = vadd.f32 %v415, %v569
    %v571 = vpop.f32.mrb[0].mxu0
    %572 = vmatprep.mubr.bf16.mxu0 0
    %573 = vmatmul.mubr.bf16.gmra.mrb[0].mxu0 %v460
    %v574 = vpop.f32.mrb[0].mxu0
    %v575 = vadd.f32 %v415, %v574
    %v576 = vpop.f32.mrb[0].mxu0
    %v577 = vpop.f32.mrb[0].mxu0
    %v578 = vadd.f32 %v415, %v577
    %v579 = vpop.f32.mrb[0].mxu0
    %580 = vmatprep.mubr.bf16.mxu0 0
    %581 = vmatmul.mubr.bf16.gmra.mrb[0].mxu0 %v463
    %v582 = vpop.f32.mrb[0].mxu0
    %v583 = vadd.f32 %v415, %v582
    %v584 = vpop.f32.mrb[0].mxu0
    %v585 = vpop.f32.mrb[0].mxu0
    %v586 = vadd.f32 %v415, %v585
    %v587 = vpop.f32.mrb[0].mxu0
    %588 = vmatprep.mubr.bf16.mxu0 0
    %589 = vmatmul.mubr.bf16.gmra.mrb[0].mxu0 %v466
    %v590 = vpop.f32.mrb[0].mxu0
    %v591 = vadd.f32 %v415, %v590
    %v592 = vpop.f32.mrb[0].mxu0
    %v593 = vpop.f32.mrb[0].mxu0
    %v594 = vadd.f32 %v415, %v593
    %v595 = vpop.f32.mrb[0].mxu0
    %596 = vmatprep.mubr.bf16.mxu0 0
    %597 = vmatmul.mubr.bf16.gmra.mrb[0].mxu0 %v469
    %v598 = vpop.f32.mrb[0].mxu0
    %v599 = vadd.f32 %v415, %v598
    %v600 = vpop.f32.mrb[0].mxu0
    %v601 = vpop.f32.mrb[0].mxu0
    %v602 = vadd.f32 %v415, %v601
    %v603 = vpop.f32.mrb[0].mxu0
    %604 = vmatprep.mubr.bf16.mxu0 0
    %605 = vmatmul.mubr.bf16.gmra.mrb[0].mxu0 %v472
    %v606 = vpop.f32.mrb[0].mxu0
    %v607 = vadd.f32 %v415, %v606
    %v608 = vpop.f32.mrb[0].mxu0
    %v609 = vpop.f32.mrb[0].mxu0
    %v610 = vadd.f32 %v415, %v609
    %v611 = vpop.f32.mrb[0].mxu0
    %612 = vmatprep.mubr.bf16.mxu0 0
    %613 = vmatmul.mubr.bf16.gmra.mrb[0].mxu0 %v475
    %v614 = vpop.f32.mrb[0].mxu0
    %v615 = vadd.f32 %v415, %v614
    %v616 = vpop.f32.mrb[0].mxu0
    %v617 = vpop.f32.mrb[0].mxu0
    %v618 = vadd.f32 %v415, %v617
    %v619 = vpop.f32.mrb[0].mxu0
    %620 = vmatprep.mubr.bf16.mxu0 0
    %621 = vmatmul.mubr.bf16.gmra.mrb[0].mxu0 %v478
    %v622 = vpop.f32.mrb[0].mxu0
    %v623 = vadd.f32 %v415, %v622
    %v624 = vpop.f32.mrb[0].mxu0
    %v625 = vpop.f32.mrb[0].mxu0
    %v626 = vadd.f32 %v415, %v625
    %v627 = vpop.f32.mrb[0].mxu0
    %628 = vmatprep.mubr.bf16.mxu0 0
    %629 = vmatmul.mubr.bf16.gmra.mrb[0].mxu0 %v481
    %v630 = vpop.f32.mrb[0].mxu0
    %v631 = vadd.f32 %v415, %v630
    %v632 = vpop.f32.mrb[0].mxu0
    %v633 = vpop.f32.mrb[0].mxu0
    %v634 = vadd.f32 %v415, %v633
    %v635 = vpop.f32.mrb[0].mxu0
    %636 = vmatprep.mubr.bf16.mxu0 0
    %637 = vmatmul.mubr.bf16.gmra.mrb[0].mxu0 %v484
    %v638 = vpop.f32.mrb[0].mxu0
    %v639 = vadd.f32 %v415, %v638
    %v640 = vpop.f32.mrb[0].mxu0
    %v641 = vpop.f32.mrb[0].mxu0
    %v642 = vadd.f32 %v415, %v641
    %v643 = vpop.f32.mrb[0].mxu0
    %644 = vmatprep.mubr.bf16.mxu0 0
    %645 = vmatmul.mubr.bf16.gmra.mrb[0].mxu0 %v487
    %v646 = vpop.f32.mrb[0].mxu0
    %v647 = vadd.f32 %v415, %v646
    %v648 = vpop.f32.mrb[0].mxu0
    %v649 = vpop.f32.mrb[0].mxu0
    %v650 = vadd.f32 %v415, %v649
    %v651 = vpop.f32.mrb[0].mxu0
    %652 = vmatprep.mubr.bf16.mxu0 0
    %653 = vmatmul.mubr.bf16.gmra.mrb[0].mxu0 %v490
    %v654 = vpop.f32.mrb[0].mxu0
    %v655 = vadd.f32 %v415, %v654
    %v656 = vpop.f32.mrb[0].mxu0
    %v657 = vpop.f32.mrb[0].mxu0
    %v658 = vpop.f32.mrb[0].mxu0
    %659 = vdwg.mxu0
    %v660 = vmax.f32 %v527, 0.0
    %v661 = vmax.f32 %v530, 0.0
    %v662 = vmax.f32 %v535, 0.0
    %v663 = vmax.f32 %v538, 0.0
    %v664 = vmax.f32 %v543, 0.0
    %v665 = vmax.f32 %v546, 0.0
    %v666 = vmax.f32 %v551, 0.0
    %v667 = vmax.f32 %v554, 0.0
    %v668 = vmax.f32 %v559, 0.0
    %v669 = vmax.f32 %v562, 0.0
    %v670 = vmax.f32 %v567, 0.0
    %v671 = vmax.f32 %v570, 0.0
    %v672 = vmax.f32 %v575, 0.0
    %v673 = vmax.f32 %v578, 0.0
    %v674 = vmax.f32 %v583, 0.0
    %v675 = vmax.f32 %v586, 0.0
    %v676 = vmax.f32 %v591, 0.0
    %v677 = vmax.f32 %v594, 0.0
    %v678 = vmax.f32 %v599, 0.0
    %v679 = vmax.f32 %v602, 0.0
    %v680 = vmax.f32 %v607, 0.0
    %v681 = vmax.f32 %v610, 0.0
    %v682 = vmax.f32 %v615, 0.0
    %v683 = vmax.f32 %v618, 0.0
    %v684 = vmax.f32 %v623, 0.0
    %v685 = vmax.f32 %v626, 0.0
    %v686 = vmax.f32 %v631, 0.0
    %v687 = vmax.f32 %v634, 0.0
    %v688 = vmax.f32 %v639, 0.0
    %v689 = vmax.f32 %v642, 0.0
    %v690 = vmax.f32 %v647, 0.0
    %v691 = vmax.f32 %v650, 0.0
    %v692 = vmax.f32 %v655, 0.0
    %v693 = vpack.c.bf16 %v661, %v660
    %v694 = vpack.c.bf16 %v663, %v662
    %v695 = vpack.c.bf16 %v665, %v664
    %v696 = vpack.c.bf16 %v667, %v666
    %v697 = vpack.c.bf16 %v669, %v668
    %v698 = vpack.c.bf16 %v671, %v670
    %v699 = vpack.c.bf16 %v673, %v672
    %v700 = vpack.c.bf16 %v675, %v674
    %v701 = vpack.c.bf16 %v677, %v676
    %v702 = vpack.c.bf16 %v679, %v678
    %v703 = vpack.c.bf16 %v681, %v680
    %v704 = vpack.c.bf16 %v683, %v682
    %v705 = vpack.c.bf16 %v685, %v684
    %v706 = vpack.c.bf16 %v687, %v686
    %v707 = vpack.c.bf16 %v689, %v688
    %v708 = vpack.c.bf16 %v691, %v690
    %v709 = vpack.c.bf16 %v692, %v692
    %v710 = vld [vmem:[%s6] sm:$0xf]
    %v711 = vld [vmem:[%s6 + $0x4] sm:$0xf]
    %v712 = vld [vmem:[%s6 + $0x8] sm:$0xf]
    %v713 = vld [vmem:[%s6 + $0xc] sm:$0xf]
    %v714 = vld [vmem:[%s7] sm:$0x1]
    %v716 = vlaneseq
    %v717 = vshrl.u32 %v716, 7
    %v718 = vsub.s32 0, %v717
    %v719 = vrot.slane %v714, %v718
    %v725 = vunpack.c.l.b16 %v710
    %v726 = vunpack.c.l.b16 %v711
    %v727 = vunpack.c.l.b16 %v712
    %v728 = vunpack.c.l.b16 %v713
    %v729 = vpack.c.b16 %v726, %v725
    %v730 = vpack.c.b16 %v728, %v727
    %vm733 = vcmask 261120
    %v735 = vsel %vm733, %v693, 0
    %v738 = vsel %vm733, %v694, 0
    %v741 = vsel %vm733, %v695, 0
    %v744 = vsel %vm733, %v696, 0
    %v747 = vsel %vm733, %v697, 0
    %v750 = vsel %vm733, %v698, 0
    %v753 = vsel %vm733, %v699, 0
    %v756 = vsel %vm733, %v700, 0
    %v759 = vsel %vm733, %v701, 0
    %v762 = vsel %vm733, %v702, 0
    %v765 = vsel %vm733, %v703, 0
    %v768 = vsel %vm733, %v704, 0
    %v771 = vsel %vm733, %v705, 0
    %v774 = vsel %vm733, %v706, 0
    %v777 = vsel %vm733, %v707, 0
    %v780 = vsel %vm733, %v708, 0
    %v783 = vsel %vm733, %v709, 0
    %785 = vmatprep.subr.bf16.mxu0 0
    %786 = vmatpush1.bf16.msra.mxu0 %v729
    %787 = vmatprep.subr.bf16.mxu0 0
    %788 = vmatpush1.bf16.msra.mxu0 %v730
    %789 = vmatprep.subr.bf16.mxu0 0
    %790 = vmatpush1.bf16.msra.mxu0 0
    %791 = vmatprep.subr.bf16.mxu0 0
    %792 = vmatpush1.bf16.msra.mxu0 0
    %793 = vmatprep.subr.bf16.mxu0 0
    %794 = vmatpush1.bf16.msra.mxu0 0
    %795 = vmatprep.subr.bf16.mxu0 0
    %796 = vmatpush1.bf16.msra.mxu0 0
    %797 = vmatprep.subr.bf16.mxu0 0
    %798 = vmatpush1.bf16.msra.mxu0 0
    %799 = vmatprep.subr.bf16.mxu0 0
    %800 = vmatpush1.bf16.msra.mxu0 0
    %801 = vmatprep.subr.bf16.mxu0 0
    %802 = vmatpush1.bf16.msra.mxu0 0
    %803 = vmatprep.subr.bf16.mxu0 0
    %804 = vmatpush1.bf16.msra.mxu0 0
    %805 = vmatprep.subr.bf16.mxu0 0
    %806 = vmatpush1.bf16.msra.mxu0 0
    %807 = vmatprep.subr.bf16.mxu0 0
    %808 = vmatpush1.bf16.msra.mxu0 0
    %809 = vmatprep.subr.bf16.mxu0 0
    %810 = vmatpush1.bf16.msra.mxu0 0
    %811 = vmatprep.subr.bf16.mxu0 0
    %812 = vmatpush1.bf16.msra.mxu0 0
    %813 = vmatprep.subr.bf16.mxu0 0
    %814 = vmatpush1.bf16.msra.mxu0 0
    %815 = vmatprep.subr.bf16.mxu0 0
    %816 = vmatpush1.bf16.msra.mxu0 0
    %817 = vmatprep.mubr.bf16.mxu0 0
    %818 = vmatmul.mubr.bf16.gmra.mrb[0].mxu0 %v735
    %v819 = vpop.f32.mrb[0].mxu0
    %v820 = vadd.f32 %v719, %v819
    %v821 = vpop.f32.mrb[0].mxu0
    %v822 = vpop.f32.mrb[0].mxu0
    %v823 = vadd.f32 %v719, %v822
    %v824 = vpop.f32.mrb[0].mxu0
    %825 = vmatprep.mubr.bf16.mxu0 0
    %826 = vmatmul.mubr.bf16.gmra.mrb[0].mxu0 %v738
    %v827 = vpop.f32.mrb[0].mxu0
    %v828 = vadd.f32 %v719, %v827
    %v829 = vpop.f32.mrb[0].mxu0
    %v830 = vpop.f32.mrb[0].mxu0
    %v831 = vadd.f32 %v719, %v830
    %v832 = vpop.f32.mrb[0].mxu0
    %833 = vmatprep.mubr.bf16.mxu0 0
    %834 = vmatmul.mubr.bf16.gmra.mrb[0].mxu0 %v741
    %v835 = vpop.f32.mrb[0].mxu0
    %v836 = vadd.f32 %v719, %v835
    %v837 = vpop.f32.mrb[0].mxu0
    %v838 = vpop.f32.mrb[0].mxu0
    %v839 = vadd.f32 %v719, %v838
    %v840 = vpop.f32.mrb[0].mxu0
    %841 = vmatprep.mubr.bf16.mxu0 0
    %842 = vmatmul.mubr.bf16.gmra.mrb[0].mxu0 %v744
    %v843 = vpop.f32.mrb[0].mxu0
    %v844 = vadd.f32 %v719, %v843
    %v845 = vpop.f32.mrb[0].mxu0
    %v846 = vpop.f32.mrb[0].mxu0
    %v847 = vadd.f32 %v719, %v846
    %v848 = vpop.f32.mrb[0].mxu0
    %849 = vmatprep.mubr.bf16.mxu0 0
    %850 = vmatmul.mubr.bf16.gmra.mrb[0].mxu0 %v747
    %v851 = vpop.f32.mrb[0].mxu0
    %v852 = vadd.f32 %v719, %v851
    %v853 = vpop.f32.mrb[0].mxu0
    %v854 = vpop.f32.mrb[0].mxu0
    %v855 = vadd.f32 %v719, %v854
    %v856 = vpop.f32.mrb[0].mxu0
    %857 = vmatprep.mubr.bf16.mxu0 0
    %858 = vmatmul.mubr.bf16.gmra.mrb[0].mxu0 %v750
    %v859 = vpop.f32.mrb[0].mxu0
    %v860 = vadd.f32 %v719, %v859
    %v861 = vpop.f32.mrb[0].mxu0
    %v862 = vpop.f32.mrb[0].mxu0
    %v863 = vadd.f32 %v719, %v862
    %v864 = vpop.f32.mrb[0].mxu0
    %865 = vmatprep.mubr.bf16.mxu0 0
    %866 = vmatmul.mubr.bf16.gmra.mrb[0].mxu0 %v753
    %v867 = vpop.f32.mrb[0].mxu0
    %v868 = vadd.f32 %v719, %v867
    %v869 = vpop.f32.mrb[0].mxu0
    %v870 = vpop.f32.mrb[0].mxu0
    %v871 = vadd.f32 %v719, %v870
    %v872 = vpop.f32.mrb[0].mxu0
    %873 = vmatprep.mubr.bf16.mxu0 0
    %874 = vmatmul.mubr.bf16.gmra.mrb[0].mxu0 %v756
    %v875 = vpop.f32.mrb[0].mxu0
    %v876 = vadd.f32 %v719, %v875
    %v877 = vpop.f32.mrb[0].mxu0
    %v878 = vpop.f32.mrb[0].mxu0
    %v879 = vadd.f32 %v719, %v878
    %v880 = vpop.f32.mrb[0].mxu0
    %881 = vmatprep.mubr.bf16.mxu0 0
    %882 = vmatmul.mubr.bf16.gmra.mrb[0].mxu0 %v759
    %v883 = vpop.f32.mrb[0].mxu0
    %v884 = vadd.f32 %v719, %v883
    %v885 = vpop.f32.mrb[0].mxu0
    %v886 = vpop.f32.mrb[0].mxu0
    %v887 = vadd.f32 %v719, %v886
    %v888 = vpop.f32.mrb[0].mxu0
    %889 = vmatprep.mubr.bf16.mxu0 0
    %890 = vmatmul.mubr.bf16.gmra.mrb[0].mxu0 %v762
    %v891 = vpop.f32.mrb[0].mxu0
    %v892 = vadd.f32 %v719, %v891
    %v893 = vpop.f32.mrb[0].mxu0
    %v894 = vpop.f32.mrb[0].mxu0
    %v895 = vadd.f32 %v719, %v894
    %v896 = vpop.f32.mrb[0].mxu0
    %897 = vmatprep.mubr.bf16.mxu0 0
    %898 = vmatmul.mubr.bf16.gmra.mrb[0].mxu0 %v765
    %v899 = vpop.f32.mrb[0].mxu0
    %v900 = vadd.f32 %v719, %v899
    %v901 = vpop.f32.mrb[0].mxu0
    %v902 = vpop.f32.mrb[0].mxu0
    %v903 = vadd.f32 %v719, %v902
    %v904 = vpop.f32.mrb[0].mxu0
    %905 = vmatprep.mubr.bf16.mxu0 0
    %906 = vmatmul.mubr.bf16.gmra.mrb[0].mxu0 %v768
    %v907 = vpop.f32.mrb[0].mxu0
    %v908 = vadd.f32 %v719, %v907
    %v909 = vpop.f32.mrb[0].mxu0
    %v910 = vpop.f32.mrb[0].mxu0
    %v911 = vadd.f32 %v719, %v910
    %v912 = vpop.f32.mrb[0].mxu0
    %913 = vmatprep.mubr.bf16.mxu0 0
    %914 = vmatmul.mubr.bf16.gmra.mrb[0].mxu0 %v771
    %v915 = vpop.f32.mrb[0].mxu0
    %v916 = vadd.f32 %v719, %v915
    %v917 = vpop.f32.mrb[0].mxu0
    %v918 = vpop.f32.mrb[0].mxu0
    %v919 = vadd.f32 %v719, %v918
    %v920 = vpop.f32.mrb[0].mxu0
    %921 = vmatprep.mubr.bf16.mxu0 0
    %922 = vmatmul.mubr.bf16.gmra.mrb[0].mxu0 %v774
    %v923 = vpop.f32.mrb[0].mxu0
    %v924 = vadd.f32 %v719, %v923
    %v925 = vpop.f32.mrb[0].mxu0
    %v926 = vpop.f32.mrb[0].mxu0
    %v927 = vadd.f32 %v719, %v926
    %v928 = vpop.f32.mrb[0].mxu0
    %929 = vmatprep.mubr.bf16.mxu0 0
    %930 = vmatmul.mubr.bf16.gmra.mrb[0].mxu0 %v777
    %v931 = vpop.f32.mrb[0].mxu0
    %v932 = vadd.f32 %v719, %v931
    %v933 = vpop.f32.mrb[0].mxu0
    %v934 = vpop.f32.mrb[0].mxu0
    %v935 = vadd.f32 %v719, %v934
    %v936 = vpop.f32.mrb[0].mxu0
    %937 = vmatprep.mubr.bf16.mxu0 0
    %938 = vmatmul.mubr.bf16.gmra.mrb[0].mxu0 %v780
    %v939 = vpop.f32.mrb[0].mxu0
    %v940 = vadd.f32 %v719, %v939
    %v941 = vpop.f32.mrb[0].mxu0
    %v942 = vpop.f32.mrb[0].mxu0
    %v943 = vadd.f32 %v719, %v942
    %v944 = vpop.f32.mrb[0].mxu0
    %945 = vmatprep.mubr.bf16.mxu0 0
    %946 = vmatmul.mubr.bf16.gmra.mrb[0].mxu0 %v783
    %v947 = vpop.f32.mrb[0].mxu0
    %v948 = vadd.f32 %v719, %v947
    %v949 = vpop.f32.mrb[0].mxu0
    %v950 = vpop.f32.mrb[0].mxu0
    %v951 = vpop.f32.mrb[0].mxu0
    %952 = vdwg.mxu0
    %v953 = vmul.f32 %v820, 1.442695
    %v954 = vpow.pop %v953
    %v955 = vmul.f32 %v823, 1.442695
    %v956 = vpow.pop %v955
    %v957 = vmul.f32 %v828, 1.442695
    %v958 = vpow.pop %v957
    %v959 = vmul.f32 %v831, 1.442695
    %v960 = vpow.pop %v959
    %v961 = vmul.f32 %v836, 1.442695
    %v962 = vpow.pop %v961
    %v963 = vmul.f32 %v839, 1.442695
    %v964 = vpow.pop %v963
    %v965 = vmul.f32 %v844, 1.442695
    %v966 = vpow.pop %v965
    %v967 = vmul.f32 %v847, 1.442695
    %v968 = vpow.pop %v967
    %v969 = vmul.f32 %v852, 1.442695
    %v970 = vpow.pop %v969
    %v971 = vmul.f32 %v855, 1.442695
    %v972 = vpow.pop %v971
    %v973 = vmul.f32 %v860, 1.442695
    %v974 = vpow.pop %v973
    %v975 = vmul.f32 %v863, 1.442695
    %v976 = vpow.pop %v975
    %v977 = vmul.f32 %v868, 1.442695
    %v978 = vpow.pop %v977
    %v979 = vmul.f32 %v871, 1.442695
    %v980 = vpow.pop %v979
    %v981 = vmul.f32 %v876, 1.442695
    %v982 = vpow.pop %v981
    %v983 = vmul.f32 %v879, 1.442695
    %v984 = vpow.pop %v983
    %v985 = vmul.f32 %v884, 1.442695
    %v986 = vpow.pop %v985
    %v987 = vmul.f32 %v887, 1.442695
    %v988 = vpow.pop %v987
    %v989 = vmul.f32 %v892, 1.442695
    %v990 = vpow.pop %v989
    %v991 = vmul.f32 %v895, 1.442695
    %v992 = vpow.pop %v991
    %v993 = vmul.f32 %v900, 1.442695
    %v994 = vpow.pop %v993
    %v995 = vmul.f32 %v903, 1.442695
    %v996 = vpow.pop %v995
    %v997 = vmul.f32 %v908, 1.442695
    %v998 = vpow.pop %v997
    %v999 = vmul.f32 %v911, 1.442695
    %v1000 = vpow.pop %v999
    %v1001 = vmul.f32 %v916, 1.442695
    %v1002 = vpow.pop %v1001
    %v1003 = vmul.f32 %v919, 1.442695
    %v1004 = vpow.pop %v1003
    %v1005 = vmul.f32 %v924, 1.442695
    %v1006 = vpow.pop %v1005
    %v1007 = vmul.f32 %v927, 1.442695
    %v1008 = vpow.pop %v1007
    %v1009 = vmul.f32 %v932, 1.442695
    %v1010 = vpow.pop %v1009
    %v1011 = vmul.f32 %v935, 1.442695
    %v1012 = vpow.pop %v1011
    %v1013 = vmul.f32 %v940, 1.442695
    %v1014 = vpow.pop %v1013
    %v1015 = vmul.f32 %v943, 1.442695
    %v1016 = vpow.pop %v1015
    %v1017 = vmul.f32 %v948, 1.442695
    %v1018 = vpow.pop %v1017
    %v1019 = vmul.f32 %v954, 0.5
    %v1020 = vmul.f32 %v956, 0.5
    %v1021 = vmul.f32 %v958, 0.5
    %v1022 = vmul.f32 %v960, 0.5
    %v1023 = vmul.f32 %v962, 0.5
    %v1024 = vmul.f32 %v964, 0.5
    %v1025 = vmul.f32 %v966, 0.5
    %v1026 = vmul.f32 %v968, 0.5
    %v1027 = vmul.f32 %v970, 0.5
    %v1028 = vmul.f32 %v972, 0.5
    %v1029 = vmul.f32 %v974, 0.5
    %v1030 = vmul.f32 %v976, 0.5
    %v1031 = vmul.f32 %v978, 0.5
    %v1032 = vmul.f32 %v980, 0.5
    %v1033 = vmul.f32 %v982, 0.5
    %v1034 = vmul.f32 %v984, 0.5
    %v1035 = vmul.f32 %v986, 0.5
    %v1036 = vmul.f32 %v988, 0.5
    %v1037 = vmul.f32 %v990, 0.5
    %v1038 = vmul.f32 %v992, 0.5
    %v1039 = vmul.f32 %v994, 0.5
    %v1040 = vmul.f32 %v996, 0.5
    %v1041 = vmul.f32 %v998, 0.5
    %v1042 = vmul.f32 %v1000, 0.5
    %v1043 = vmul.f32 %v1002, 0.5
    %v1044 = vmul.f32 %v1004, 0.5
    %v1045 = vmul.f32 %v1006, 0.5
    %v1046 = vmul.f32 %v1008, 0.5
    %v1047 = vmul.f32 %v1010, 0.5
    %v1048 = vmul.f32 %v1012, 0.5
    %v1049 = vmul.f32 %v1014, 0.5
    %v1050 = vmul.f32 %v1016, 0.5
    %v1051 = vmul.f32 %v1018, 0.5
    %v1052 = vld [vmem:[%s1] sm:$0xff]
    %v1053 = vld [vmem:[%s1 + $0x8] sm:$0xff]
    %v1054 = vld [vmem:[%s1 + $0x10] sm:$0xff]
    %v1055 = vld [vmem:[%s1 + $0x18] sm:$0xff]
    %v1056 = vld [vmem:[%s1 + $0x20] sm:$0xff]
    %v1057 = vld [vmem:[%s1 + $0x28] sm:$0xff]
    %v1058 = vld [vmem:[%s1 + $0x30] sm:$0xff]
    %v1059 = vld [vmem:[%s1 + $0x38] sm:$0xff]
    %v1060 = vld [vmem:[%s1 + $0x40] sm:$0xff]
    %v1061 = vld [vmem:[%s1 + $0x48] sm:$0xff]
    %v1062 = vld [vmem:[%s1 + $0x50] sm:$0xff]
    %v1063 = vld [vmem:[%s1 + $0x58] sm:$0xff]
    %v1064 = vld [vmem:[%s1 + $0x60] sm:$0xff]
    %v1065 = vld [vmem:[%s1 + $0x68] sm:$0xff]
    %v1066 = vld [vmem:[%s1 + $0x70] sm:$0xff]
    %v1067 = vld [vmem:[%s1 + $0x78] sm:$0xff]
    %v1068 = vld [vmem:[%s1 + $0x80] sm:$0xff]
    %v1069 = vld [vmem:[%s1 + $0x88] sm:$0xff]
    %v1070 = vld [vmem:[%s1 + $0x90] sm:$0xff]
    %v1071 = vld [vmem:[%s1 + $0x98] sm:$0xff]
    %v1072 = vld [vmem:[%s1 + $0xa0] sm:$0xff]
    %v1073 = vld [vmem:[%s1 + $0xa8] sm:$0xff]
    %v1074 = vld [vmem:[%s1 + $0xb0] sm:$0xff]
    %v1075 = vld [vmem:[%s1 + $0xb8] sm:$0xff]
    %v1076 = vld [vmem:[%s1 + $0xc0] sm:$0xff]
    %v1077 = vld [vmem:[%s1 + $0xc8] sm:$0xff]
    %v1078 = vld [vmem:[%s1 + $0xd0] sm:$0xff]
    %v1079 = vld [vmem:[%s1 + $0xd8] sm:$0xff]
    %v1080 = vld [vmem:[%s1 + $0xe0] sm:$0xff]
    %v1081 = vld [vmem:[%s1 + $0xe8] sm:$0xff]
    %v1082 = vld [vmem:[%s1 + $0xf0] sm:$0xff]
    %v1083 = vld [vmem:[%s1 + $0xf8] sm:$0xff]
    %v1084 = vld [vmem:[%s1 + $0x100] sm:$0xff]
    %1118 = vrot.lane.b32.xlu0 %v1019, 96
    %v1119 = vpop.permute.xlu0 %1118
    %1120 = vrot.lane.b32.xlu0 %v1020, 96
    %v1121 = vpop.permute.xlu0 %1120
    %1122 = vrot.lane.b32.xlu0 %v1021, 96
    %v1123 = vpop.permute.xlu0 %1122
    %1124 = vrot.lane.b32.xlu0 %v1022, 96
    %v1125 = vpop.permute.xlu0 %1124
    %1126 = vrot.lane.b32.xlu0 %v1023, 96
    %v1127 = vpop.permute.xlu0 %1126
    %1128 = vrot.lane.b32.xlu0 %v1024, 96
    %v1129 = vpop.permute.xlu0 %1128
    %1130 = vrot.lane.b32.xlu0 %v1025, 96
    %v1131 = vpop.permute.xlu0 %1130
    %1132 = vrot.lane.b32.xlu0 %v1026, 96
    %v1133 = vpop.permute.xlu0 %1132
    %1134 = vrot.lane.b32.xlu0 %v1027, 96
    %v1135 = vpop.permute.xlu0 %1134
    %1136 = vrot.lane.b32.xlu0 %v1028, 96
    %v1137 = vpop.permute.xlu0 %1136
    %1138 = vrot.lane.b32.xlu0 %v1029, 96
    %v1139 = vpop.permute.xlu0 %1138
    %1140 = vrot.lane.b32.xlu0 %v1030, 96
    %v1141 = vpop.permute.xlu0 %1140
    %1142 = vrot.lane.b32.xlu0 %v1031, 96
    %v1143 = vpop.permute.xlu0 %1142
    %1144 = vrot.lane.b32.xlu0 %v1032, 96
    %v1145 = vpop.permute.xlu0 %1144
    %1146 = vrot.lane.b32.xlu0 %v1033, 96
    %v1147 = vpop.permute.xlu0 %1146
    %1148 = vrot.lane.b32.xlu0 %v1034, 96
    %v1149 = vpop.permute.xlu0 %1148
    %1150 = vrot.lane.b32.xlu0 %v1035, 96
    %v1151 = vpop.permute.xlu0 %1150
    %1152 = vrot.lane.b32.xlu0 %v1036, 96
    %v1153 = vpop.permute.xlu0 %1152
    %1154 = vrot.lane.b32.xlu0 %v1037, 96
    %v1155 = vpop.permute.xlu0 %1154
    %1156 = vrot.lane.b32.xlu0 %v1038, 96
    %v1157 = vpop.permute.xlu0 %1156
    %1158 = vrot.lane.b32.xlu0 %v1039, 96
    %v1159 = vpop.permute.xlu0 %1158
    %1160 = vrot.lane.b32.xlu0 %v1040, 96
    %v1161 = vpop.permute.xlu0 %1160
    %1162 = vrot.lane.b32.xlu0 %v1041, 96
    %v1163 = vpop.permute.xlu0 %1162
    %1164 = vrot.lane.b32.xlu0 %v1042, 96
    %v1165 = vpop.permute.xlu0 %1164
    %1166 = vrot.lane.b32.xlu0 %v1043, 96
    %v1167 = vpop.permute.xlu0 %1166
    %1168 = vrot.lane.b32.xlu0 %v1044, 96
    %v1169 = vpop.permute.xlu0 %1168
    %1170 = vrot.lane.b32.xlu0 %v1045, 96
    %v1171 = vpop.permute.xlu0 %1170
    %1172 = vrot.lane.b32.xlu0 %v1046, 96
    %v1173 = vpop.permute.xlu0 %1172
    %1174 = vrot.lane.b32.xlu0 %v1047, 96
    %v1175 = vpop.permute.xlu0 %1174
    %1176 = vrot.lane.b32.xlu0 %v1048, 96
    %v1177 = vpop.permute.xlu0 %1176
    %1178 = vrot.lane.b32.xlu0 %v1049, 96
    %v1179 = vpop.permute.xlu0 %1178
    %1180 = vrot.lane.b32.xlu0 %v1050, 96
    %v1181 = vpop.permute.xlu0 %1180
    %1182 = vrot.lane.b32.xlu0 %v1051, 96
    %v1183 = vpop.permute.xlu0 %1182
    %v1217 = vmul.f32 %v1052, %v1119
    %v1218 = vmul.f32 %v1053, %v1121
    %v1219 = vmul.f32 %v1054, %v1123
    %v1220 = vmul.f32 %v1055, %v1125
    %v1221 = vmul.f32 %v1056, %v1127
    %v1222 = vmul.f32 %v1057, %v1129
    %v1223 = vmul.f32 %v1058, %v1131
    %v1224 = vmul.f32 %v1059, %v1133
    %v1225 = vmul.f32 %v1060, %v1135
    %v1226 = vmul.f32 %v1061, %v1137
    %v1227 = vmul.f32 %v1062, %v1139
    %v1228 = vmul.f32 %v1063, %v1141
    %v1229 = vmul.f32 %v1064, %v1143
    %v1230 = vmul.f32 %v1065, %v1145
    %v1231 = vmul.f32 %v1066, %v1147
    %v1232 = vmul.f32 %v1067, %v1149
    %v1233 = vmul.f32 %v1068, %v1151
    %v1234 = vmul.f32 %v1069, %v1153
    %v1235 = vmul.f32 %v1070, %v1155
    %v1236 = vmul.f32 %v1071, %v1157
    %v1237 = vmul.f32 %v1072, %v1159
    %v1238 = vmul.f32 %v1073, %v1161
    %v1239 = vmul.f32 %v1074, %v1163
    %v1240 = vmul.f32 %v1075, %v1165
    %v1241 = vmul.f32 %v1076, %v1167
    %v1242 = vmul.f32 %v1077, %v1169
    %v1243 = vmul.f32 %v1078, %v1171
    %v1244 = vmul.f32 %v1079, %v1173
    %v1245 = vmul.f32 %v1080, %v1175
    %v1246 = vmul.f32 %v1081, %v1177
    %v1247 = vmul.f32 %v1082, %v1179
    %v1248 = vmul.f32 %v1083, %v1181
    %v1249 = vmul.f32 %v1084, %v1183
    %v1250 = vadd.f32 %v820, %v1217
    %v1251 = vadd.f32 %v823, %v1218
    %v1252 = vadd.f32 %v828, %v1219
    %v1253 = vadd.f32 %v831, %v1220
    %v1254 = vadd.f32 %v836, %v1221
    %v1255 = vadd.f32 %v839, %v1222
    %v1256 = vadd.f32 %v844, %v1223
    %v1257 = vadd.f32 %v847, %v1224
    %v1258 = vadd.f32 %v852, %v1225
    %v1259 = vadd.f32 %v855, %v1226
    %v1260 = vadd.f32 %v860, %v1227
    %v1261 = vadd.f32 %v863, %v1228
    %v1262 = vadd.f32 %v868, %v1229
    %v1263 = vadd.f32 %v871, %v1230
    %v1264 = vadd.f32 %v876, %v1231
    %v1265 = vadd.f32 %v879, %v1232
    %v1266 = vadd.f32 %v884, %v1233
    %v1267 = vadd.f32 %v887, %v1234
    %v1268 = vadd.f32 %v892, %v1235
    %v1269 = vadd.f32 %v895, %v1236
    %v1270 = vadd.f32 %v900, %v1237
    %v1271 = vadd.f32 %v903, %v1238
    %v1272 = vadd.f32 %v908, %v1239
    %v1273 = vadd.f32 %v911, %v1240
    %v1274 = vadd.f32 %v916, %v1241
    %v1275 = vadd.f32 %v919, %v1242
    %v1276 = vadd.f32 %v924, %v1243
    %v1277 = vadd.f32 %v927, %v1244
    %v1278 = vadd.f32 %v932, %v1245
    %v1279 = vadd.f32 %v935, %v1246
    %v1280 = vadd.f32 %v940, %v1247
    %v1281 = vadd.f32 %v943, %v1248
    %v1282 = vadd.f32 %v948, %v1249
    %v1283 = vmax.f32 %v1250, 0.0
    %v1284 = vmax.f32 %v1251, 0.0
    %v1285 = vmax.f32 %v1252, 0.0
    %v1286 = vmax.f32 %v1253, 0.0
    %v1287 = vmax.f32 %v1254, 0.0
    %v1288 = vmax.f32 %v1255, 0.0
    %v1289 = vmax.f32 %v1256, 0.0
    %v1290 = vmax.f32 %v1257, 0.0
    %v1291 = vmax.f32 %v1258, 0.0
    %v1292 = vmax.f32 %v1259, 0.0
    %v1293 = vmax.f32 %v1260, 0.0
    %v1294 = vmax.f32 %v1261, 0.0
    %v1295 = vmax.f32 %v1262, 0.0
    %v1296 = vmax.f32 %v1263, 0.0
    %v1297 = vmax.f32 %v1264, 0.0
    %v1298 = vmax.f32 %v1265, 0.0
    %v1299 = vmax.f32 %v1266, 0.0
    %v1300 = vmax.f32 %v1267, 0.0
    %v1301 = vmax.f32 %v1268, 0.0
    %v1302 = vmax.f32 %v1269, 0.0
    %v1303 = vmax.f32 %v1270, 0.0
    %v1304 = vmax.f32 %v1271, 0.0
    %v1305 = vmax.f32 %v1272, 0.0
    %v1306 = vmax.f32 %v1273, 0.0
    %v1307 = vmax.f32 %v1274, 0.0
    %v1308 = vmax.f32 %v1275, 0.0
    %v1309 = vmax.f32 %v1276, 0.0
    %v1310 = vmax.f32 %v1277, 0.0
    %v1311 = vmax.f32 %v1278, 0.0
    %v1312 = vmax.f32 %v1279, 0.0
    %v1313 = vmax.f32 %v1280, 0.0
    %v1314 = vmax.f32 %v1281, 0.0
    %v1315 = vmax.f32 %v1282, 0.0
    %v1316 = vpack.c.bf16 %v1284, %v1283
    %v1317 = vpack.c.bf16 %v1286, %v1285
    %v1318 = vpack.c.bf16 %v1288, %v1287
    %v1319 = vpack.c.bf16 %v1290, %v1289
    %v1320 = vpack.c.bf16 %v1292, %v1291
    %v1321 = vpack.c.bf16 %v1294, %v1293
    %v1322 = vpack.c.bf16 %v1296, %v1295
    %v1323 = vpack.c.bf16 %v1298, %v1297
    %v1324 = vpack.c.bf16 %v1300, %v1299
    %v1325 = vpack.c.bf16 %v1302, %v1301
    %v1326 = vpack.c.bf16 %v1304, %v1303
    %v1327 = vpack.c.bf16 %v1306, %v1305
    %v1328 = vpack.c.bf16 %v1308, %v1307
    %v1329 = vpack.c.bf16 %v1310, %v1309
    %v1330 = vpack.c.bf16 %v1312, %v1311
    %v1331 = vpack.c.bf16 %v1314, %v1313
    %v1332 = vpack.c.bf16 %v1315, %v1315
    %v1333 = vld [vmem:[%s8] sm:$0xf]
    %v1334 = vld [vmem:[%s8 + $0x4] sm:$0xf]
    %v1335 = vld [vmem:[%s8 + $0x8] sm:$0xf]
    %v1336 = vld [vmem:[%s8 + $0xc] sm:$0xf]
    %v1337 = vld [vmem:[%s9] sm:$0x1]
    %v1339 = vlaneseq
    %v1340 = vshrl.u32 %v1339, 7
    %v1341 = vsub.s32 0, %v1340
    %v1342 = vrot.slane %v1337, %v1341
    %v1348 = vunpack.c.l.b16 %v1333
    %v1349 = vunpack.c.l.b16 %v1334
    %v1350 = vunpack.c.l.b16 %v1335
    %v1351 = vunpack.c.l.b16 %v1336
    %v1352 = vpack.c.b16 %v1349, %v1348
    %v1353 = vpack.c.b16 %v1351, %v1350
    %v1357 = vsel %vm733, %v1316, 0
    %v1360 = vsel %vm733, %v1317, 0
    %v1363 = vsel %vm733, %v1318, 0
    %v1366 = vsel %vm733, %v1319, 0
    %v1369 = vsel %vm733, %v1320, 0
    %v1372 = vsel %vm733, %v1321, 0
    %v1375 = vsel %vm733, %v1322, 0
    %v1378 = vsel %vm733, %v1323, 0
    %v1381 = vsel %vm733, %v1324, 0
    %v1384 = vsel %vm733, %v1325, 0
    %v1387 = vsel %vm733, %v1326, 0
    %v1390 = vsel %vm733, %v1327, 0
    %v1393 = vsel %vm733, %v1328, 0
    %v1396 = vsel %vm733, %v1329, 0
    %v1399 = vsel %vm733, %v1330, 0
    %v1402 = vsel %vm733, %v1331, 0
    %v1405 = vsel %vm733, %v1332, 0
    %1407 = vmatprep.subr.bf16.mxu0 0
    %1408 = vmatpush1.bf16.msra.mxu0 %v1352
    %1409 = vmatprep.subr.bf16.mxu0 0
    %1410 = vmatpush1.bf16.msra.mxu0 %v1353
    %1411 = vmatprep.subr.bf16.mxu0 0
    %1412 = vmatpush1.bf16.msra.mxu0 0
    %1413 = vmatprep.subr.bf16.mxu0 0
    %1414 = vmatpush1.bf16.msra.mxu0 0
    %1415 = vmatprep.subr.bf16.mxu0 0
    %1416 = vmatpush1.bf16.msra.mxu0 0
    %1417 = vmatprep.subr.bf16.mxu0 0
    %1418 = vmatpush1.bf16.msra.mxu0 0
    %1419 = vmatprep.subr.bf16.mxu0 0
    %1420 = vmatpush1.bf16.msra.mxu0 0
    %1421 = vmatprep.subr.bf16.mxu0 0
    %1422 = vmatpush1.bf16.msra.mxu0 0
    %1423 = vmatprep.subr.bf16.mxu0 0
    %1424 = vmatpush1.bf16.msra.mxu0 0
    %1425 = vmatprep.subr.bf16.mxu0 0
    %1426 = vmatpush1.bf16.msra.mxu0 0
    %1427 = vmatprep.subr.bf16.mxu0 0
    %1428 = vmatpush1.bf16.msra.mxu0 0
    %1429 = vmatprep.subr.bf16.mxu0 0
    %1430 = vmatpush1.bf16.msra.mxu0 0
    %1431 = vmatprep.subr.bf16.mxu0 0
    %1432 = vmatpush1.bf16.msra.mxu0 0
    %1433 = vmatprep.subr.bf16.mxu0 0
    %1434 = vmatpush1.bf16.msra.mxu0 0
    %1435 = vmatprep.subr.bf16.mxu0 0
    %1436 = vmatpush1.bf16.msra.mxu0 0
    %1437 = vmatprep.subr.bf16.mxu0 0
    %1438 = vmatpush1.bf16.msra.mxu0 0
    %1439 = vmatprep.mubr.bf16.mxu0 0
    %1440 = vmatmul.mubr.bf16.gmra.mrb[0].mxu0 %v1357
    %v1441 = vpop.f32.mrb[0].mxu0
    %v1442 = vadd.f32 %v1342, %v1441
    %v1443 = vpop.f32.mrb[0].mxu0
    %v1444 = vpop.f32.mrb[0].mxu0
    %v1445 = vadd.f32 %v1342, %v1444
    %v1446 = vpop.f32.mrb[0].mxu0
    %1447 = vmatprep.mubr.bf16.mxu0 0
    %1448 = vmatmul.mubr.bf16.gmra.mrb[0].mxu0 %v1360
    %v1449 = vpop.f32.mrb[0].mxu0
    %v1450 = vadd.f32 %v1342, %v1449
    %v1451 = vpop.f32.mrb[0].mxu0
    %v1452 = vpop.f32.mrb[0].mxu0
    %v1453 = vadd.f32 %v1342, %v1452
    %v1454 = vpop.f32.mrb[0].mxu0
    %1455 = vmatprep.mubr.bf16.mxu0 0
    %1456 = vmatmul.mubr.bf16.gmra.mrb[0].mxu0 %v1363
    %v1457 = vpop.f32.mrb[0].mxu0
    %v1458 = vadd.f32 %v1342, %v1457
    %v1459 = vpop.f32.mrb[0].mxu0
    %v1460 = vpop.f32.mrb[0].mxu0
    %v1461 = vadd.f32 %v1342, %v1460
    %v1462 = vpop.f32.mrb[0].mxu0
    %1463 = vmatprep.mubr.bf16.mxu0 0
    %1464 = vmatmul.mubr.bf16.gmra.mrb[0].mxu0 %v1366
    %v1465 = vpop.f32.mrb[0].mxu0
    %v1466 = vadd.f32 %v1342, %v1465
    %v1467 = vpop.f32.mrb[0].mxu0
    %v1468 = vpop.f32.mrb[0].mxu0
    %v1469 = vadd.f32 %v1342, %v1468
    %v1470 = vpop.f32.mrb[0].mxu0
    %1471 = vmatprep.mubr.bf16.mxu0 0
    %1472 = vmatmul.mubr.bf16.gmra.mrb[0].mxu0 %v1369
    %v1473 = vpop.f32.mrb[0].mxu0
    %v1474 = vadd.f32 %v1342, %v1473
    %v1475 = vpop.f32.mrb[0].mxu0
    %v1476 = vpop.f32.mrb[0].mxu0
    %v1477 = vadd.f32 %v1342, %v1476
    %v1478 = vpop.f32.mrb[0].mxu0
    %1479 = vmatprep.mubr.bf16.mxu0 0
    %1480 = vmatmul.mubr.bf16.gmra.mrb[0].mxu0 %v1372
    %v1481 = vpop.f32.mrb[0].mxu0
    %v1482 = vadd.f32 %v1342, %v1481
    %v1483 = vpop.f32.mrb[0].mxu0
    %v1484 = vpop.f32.mrb[0].mxu0
    %v1485 = vadd.f32 %v1342, %v1484
    %v1486 = vpop.f32.mrb[0].mxu0
    %1487 = vmatprep.mubr.bf16.mxu0 0
    %1488 = vmatmul.mubr.bf16.gmra.mrb[0].mxu0 %v1375
    %v1489 = vpop.f32.mrb[0].mxu0
    %v1490 = vadd.f32 %v1342, %v1489
    %v1491 = vpop.f32.mrb[0].mxu0
    %v1492 = vpop.f32.mrb[0].mxu0
    %v1493 = vadd.f32 %v1342, %v1492
    %v1494 = vpop.f32.mrb[0].mxu0
    %1495 = vmatprep.mubr.bf16.mxu0 0
    %1496 = vmatmul.mubr.bf16.gmra.mrb[0].mxu0 %v1378
    %v1497 = vpop.f32.mrb[0].mxu0
    %v1498 = vadd.f32 %v1342, %v1497
    %v1499 = vpop.f32.mrb[0].mxu0
    %v1500 = vpop.f32.mrb[0].mxu0
    %v1501 = vadd.f32 %v1342, %v1500
    %v1502 = vpop.f32.mrb[0].mxu0
    %1503 = vmatprep.mubr.bf16.mxu0 0
    %1504 = vmatmul.mubr.bf16.gmra.mrb[0].mxu0 %v1381
    %v1505 = vpop.f32.mrb[0].mxu0
    %v1506 = vadd.f32 %v1342, %v1505
    %v1507 = vpop.f32.mrb[0].mxu0
    %v1508 = vpop.f32.mrb[0].mxu0
    %v1509 = vadd.f32 %v1342, %v1508
    %v1510 = vpop.f32.mrb[0].mxu0
    %1511 = vmatprep.mubr.bf16.mxu0 0
    %1512 = vmatmul.mubr.bf16.gmra.mrb[0].mxu0 %v1384
    %v1513 = vpop.f32.mrb[0].mxu0
    %v1514 = vadd.f32 %v1342, %v1513
    %v1515 = vpop.f32.mrb[0].mxu0
    %v1516 = vpop.f32.mrb[0].mxu0
    %v1517 = vadd.f32 %v1342, %v1516
    %v1518 = vpop.f32.mrb[0].mxu0
    %1519 = vmatprep.mubr.bf16.mxu0 0
    %1520 = vmatmul.mubr.bf16.gmra.mrb[0].mxu0 %v1387
    %v1521 = vpop.f32.mrb[0].mxu0
    %v1522 = vadd.f32 %v1342, %v1521
    %v1523 = vpop.f32.mrb[0].mxu0
    %v1524 = vpop.f32.mrb[0].mxu0
    %v1525 = vadd.f32 %v1342, %v1524
    %v1526 = vpop.f32.mrb[0].mxu0
    %1527 = vmatprep.mubr.bf16.mxu0 0
    %1528 = vmatmul.mubr.bf16.gmra.mrb[0].mxu0 %v1390
    %v1529 = vpop.f32.mrb[0].mxu0
    %v1530 = vadd.f32 %v1342, %v1529
    %v1531 = vpop.f32.mrb[0].mxu0
    %v1532 = vpop.f32.mrb[0].mxu0
    %v1533 = vadd.f32 %v1342, %v1532
    %v1534 = vpop.f32.mrb[0].mxu0
    %1535 = vmatprep.mubr.bf16.mxu0 0
    %1536 = vmatmul.mubr.bf16.gmra.mrb[0].mxu0 %v1393
    %v1537 = vpop.f32.mrb[0].mxu0
    %v1538 = vadd.f32 %v1342, %v1537
    %v1539 = vpop.f32.mrb[0].mxu0
    %v1540 = vpop.f32.mrb[0].mxu0
    %v1541 = vadd.f32 %v1342, %v1540
    %v1542 = vpop.f32.mrb[0].mxu0
    %1543 = vmatprep.mubr.bf16.mxu0 0
    %1544 = vmatmul.mubr.bf16.gmra.mrb[0].mxu0 %v1396
    %v1545 = vpop.f32.mrb[0].mxu0
    %v1546 = vadd.f32 %v1342, %v1545
    %v1547 = vpop.f32.mrb[0].mxu0
    %v1548 = vpop.f32.mrb[0].mxu0
    %v1549 = vadd.f32 %v1342, %v1548
    %v1550 = vpop.f32.mrb[0].mxu0
    %1551 = vmatprep.mubr.bf16.mxu0 0
    %1552 = vmatmul.mubr.bf16.gmra.mrb[0].mxu0 %v1399
    %v1553 = vpop.f32.mrb[0].mxu0
    %v1554 = vadd.f32 %v1342, %v1553
    %v1555 = vpop.f32.mrb[0].mxu0
    %v1556 = vpop.f32.mrb[0].mxu0
    %v1557 = vadd.f32 %v1342, %v1556
    %v1558 = vpop.f32.mrb[0].mxu0
    %1559 = vmatprep.mubr.bf16.mxu0 0
    %1560 = vmatmul.mubr.bf16.gmra.mrb[0].mxu0 %v1402
    %v1561 = vpop.f32.mrb[0].mxu0
    %v1562 = vadd.f32 %v1342, %v1561
    %v1563 = vpop.f32.mrb[0].mxu0
    %v1564 = vpop.f32.mrb[0].mxu0
    %v1565 = vadd.f32 %v1342, %v1564
    %v1566 = vpop.f32.mrb[0].mxu0
    %1567 = vmatprep.mubr.bf16.mxu0 0
    %1568 = vmatmul.mubr.bf16.gmra.mrb[0].mxu0 %v1405
    %v1569 = vpop.f32.mrb[0].mxu0
    %v1570 = vadd.f32 %v1342, %v1569
    %v1571 = vpop.f32.mrb[0].mxu0
    %v1572 = vpop.f32.mrb[0].mxu0
    %v1573 = vpop.f32.mrb[0].mxu0
    %1574 = vdwg.mxu0
    %v1575 = vmax.f32 %v1442, 0.0
    %v1576 = vmax.f32 %v1445, 0.0
    %v1577 = vmax.f32 %v1450, 0.0
    %v1578 = vmax.f32 %v1453, 0.0
    %v1579 = vmax.f32 %v1458, 0.0
    %v1580 = vmax.f32 %v1461, 0.0
    %v1581 = vmax.f32 %v1466, 0.0
    %v1582 = vmax.f32 %v1469, 0.0
    %v1583 = vmax.f32 %v1474, 0.0
    %v1584 = vmax.f32 %v1477, 0.0
    %v1585 = vmax.f32 %v1482, 0.0
    %v1586 = vmax.f32 %v1485, 0.0
    %v1587 = vmax.f32 %v1490, 0.0
    %v1588 = vmax.f32 %v1493, 0.0
    %v1589 = vmax.f32 %v1498, 0.0
    %v1590 = vmax.f32 %v1501, 0.0
    %v1591 = vmax.f32 %v1506, 0.0
    %v1592 = vmax.f32 %v1509, 0.0
    %v1593 = vmax.f32 %v1514, 0.0
    %v1594 = vmax.f32 %v1517, 0.0
    %v1595 = vmax.f32 %v1522, 0.0
    %v1596 = vmax.f32 %v1525, 0.0
    %v1597 = vmax.f32 %v1530, 0.0
    %v1598 = vmax.f32 %v1533, 0.0
    %v1599 = vmax.f32 %v1538, 0.0
    %v1600 = vmax.f32 %v1541, 0.0
    %v1601 = vmax.f32 %v1546, 0.0
    %v1602 = vmax.f32 %v1549, 0.0
    %v1603 = vmax.f32 %v1554, 0.0
    %v1604 = vmax.f32 %v1557, 0.0
    %v1605 = vmax.f32 %v1562, 0.0
    %v1606 = vmax.f32 %v1565, 0.0
    %v1607 = vmax.f32 %v1570, 0.0
    %v1608 = vpack.c.bf16 %v1576, %v1575
    %v1609 = vpack.c.bf16 %v1578, %v1577
    %v1610 = vpack.c.bf16 %v1580, %v1579
    %v1611 = vpack.c.bf16 %v1582, %v1581
    %v1612 = vpack.c.bf16 %v1584, %v1583
    %v1613 = vpack.c.bf16 %v1586, %v1585
    %v1614 = vpack.c.bf16 %v1588, %v1587
    %v1615 = vpack.c.bf16 %v1590, %v1589
    %v1616 = vpack.c.bf16 %v1592, %v1591
    %v1617 = vpack.c.bf16 %v1594, %v1593
    %v1618 = vpack.c.bf16 %v1596, %v1595
    %v1619 = vpack.c.bf16 %v1598, %v1597
    %v1620 = vpack.c.bf16 %v1600, %v1599
    %v1621 = vpack.c.bf16 %v1602, %v1601
    %v1622 = vpack.c.bf16 %v1604, %v1603
    %v1623 = vpack.c.bf16 %v1606, %v1605
    %v1624 = vpack.c.bf16 %v1607, %v1607
    %v1625 = vld [vmem:[%s10] sm:$0xf]
    %v1626 = vld [vmem:[%s10 + $0x4] sm:$0xf]
    %v1627 = vld [vmem:[%s10 + $0x8] sm:$0xf]
    %v1628 = vld [vmem:[%s10 + $0xc] sm:$0xf]
    %v1629 = vld [vmem:[%s10 + $0x10] sm:$0xf]
    %v1630 = vld [vmem:[%s10 + $0x14] sm:$0xf]
    %v1631 = vld [vmem:[%s10 + $0x18] sm:$0xf]
    %v1632 = vld [vmem:[%s10 + $0x1c] sm:$0xf]
    %v1633 = vld [vmem:[%s11] sm:$0x1]
    %v1635 = vlaneseq
    %v1636 = vshrl.u32 %v1635, 7
    %v1637 = vsub.s32 0, %v1636
    %v1638 = vrot.slane %v1633, %v1637
    %v1648 = vunpack.c.l.b16 %v1625
    %v1649 = vunpack.c.l.b16 %v1626
    %v1650 = vunpack.c.l.b16 %v1627
    %v1651 = vunpack.c.l.b16 %v1628
    %v1652 = vunpack.c.l.b16 %v1629
    %v1653 = vunpack.c.l.b16 %v1630
    %v1654 = vunpack.c.l.b16 %v1631
    %v1655 = vunpack.c.l.b16 %v1632
    %v1656 = vpack.c.b16 %v1649, %v1648
    %v1657 = vpack.c.b16 %v1651, %v1650
    %v1658 = vpack.c.b16 %v1653, %v1652
    %v1659 = vpack.c.b16 %v1655, %v1654
    %v1665 = vsel %vm132, %v1608, 0
    %v1668 = vsel %vm132, %v1609, 0
    %v1671 = vsel %vm132, %v1610, 0
    %v1674 = vsel %vm132, %v1611, 0
    %v1677 = vsel %vm132, %v1612, 0
    %v1680 = vsel %vm132, %v1613, 0
    %v1683 = vsel %vm132, %v1614, 0
    %v1686 = vsel %vm132, %v1615, 0
    %v1689 = vsel %vm132, %v1616, 0
    %v1692 = vsel %vm132, %v1617, 0
    %v1695 = vsel %vm132, %v1618, 0
    %v1698 = vsel %vm132, %v1619, 0
    %v1701 = vsel %vm132, %v1620, 0
    %v1704 = vsel %vm132, %v1621, 0
    %v1707 = vsel %vm132, %v1622, 0
    %v1710 = vsel %vm132, %v1623, 0
    %v1713 = vsel %vm132, %v1624, 0
    %1715 = vmatprep.subr.bf16.mxu0 0
    %1716 = vmatpush1.bf16.msra.mxu0 %v1656
    %1717 = vmatprep.subr.bf16.mxu0 0
    %1718 = vmatpush1.bf16.msra.mxu0 %v1657
    %1719 = vmatprep.subr.bf16.mxu0 0
    %1720 = vmatpush1.bf16.msra.mxu0 %v1658
    %1721 = vmatprep.subr.bf16.mxu0 0
    %1722 = vmatpush1.bf16.msra.mxu0 %v1659
    %1723 = vmatprep.subr.bf16.mxu0 0
    %1724 = vmatpush1.bf16.msra.mxu0 0
    %1725 = vmatprep.subr.bf16.mxu0 0
    %1726 = vmatpush1.bf16.msra.mxu0 0
    %1727 = vmatprep.subr.bf16.mxu0 0
    %1728 = vmatpush1.bf16.msra.mxu0 0
    %1729 = vmatprep.subr.bf16.mxu0 0
    %1730 = vmatpush1.bf16.msra.mxu0 0
    %1731 = vmatprep.subr.bf16.mxu0 0
    %1732 = vmatpush1.bf16.msra.mxu0 0
    %1733 = vmatprep.subr.bf16.mxu0 0
    %1734 = vmatpush1.bf16.msra.mxu0 0
    %1735 = vmatprep.subr.bf16.mxu0 0
    %1736 = vmatpush1.bf16.msra.mxu0 0
    %1737 = vmatprep.subr.bf16.mxu0 0
    %1738 = vmatpush1.bf16.msra.mxu0 0
    %1739 = vmatprep.subr.bf16.mxu0 0
    %1740 = vmatpush1.bf16.msra.mxu0 0
    %1741 = vmatprep.subr.bf16.mxu0 0
    %1742 = vmatpush1.bf16.msra.mxu0 0
    %1743 = vmatprep.subr.bf16.mxu0 0
    %1744 = vmatpush1.bf16.msra.mxu0 0
    %1745 = vmatprep.subr.bf16.mxu0 0
    %1746 = vmatpush1.bf16.msra.mxu0 0
    %1747 = vmatprep.mubr.bf16.mxu0 0
    %1748 = vmatmul.mubr.bf16.gmra.mrb[0].mxu0 %v1665
    %v1749 = vpop.f32.mrb[0].mxu0
    %v1750 = vadd.f32 %v1638, %v1749
    %v1751 = vpop.f32.mrb[0].mxu0
    %v1752 = vpop.f32.mrb[0].mxu0
    %v1753 = vadd.f32 %v1638, %v1752
    %v1754 = vpop.f32.mrb[0].mxu0
    %1755 = vmatprep.mubr.bf16.mxu0 0
    %1756 = vmatmul.mubr.bf16.gmra.mrb[0].mxu0 %v1668
    %v1757 = vpop.f32.mrb[0].mxu0
    %v1758 = vadd.f32 %v1638, %v1757
    %v1759 = vpop.f32.mrb[0].mxu0
    %v1760 = vpop.f32.mrb[0].mxu0
    %v1761 = vadd.f32 %v1638, %v1760
    %v1762 = vpop.f32.mrb[0].mxu0
    %1763 = vmatprep.mubr.bf16.mxu0 0
    %1764 = vmatmul.mubr.bf16.gmra.mrb[0].mxu0 %v1671
    %v1765 = vpop.f32.mrb[0].mxu0
    %v1766 = vadd.f32 %v1638, %v1765
    %v1767 = vpop.f32.mrb[0].mxu0
    %v1768 = vpop.f32.mrb[0].mxu0
    %v1769 = vadd.f32 %v1638, %v1768
    %v1770 = vpop.f32.mrb[0].mxu0
    %1771 = vmatprep.mubr.bf16.mxu0 0
    %1772 = vmatmul.mubr.bf16.gmra.mrb[0].mxu0 %v1674
    %v1773 = vpop.f32.mrb[0].mxu0
    %v1774 = vadd.f32 %v1638, %v1773
    %v1775 = vpop.f32.mrb[0].mxu0
    %v1776 = vpop.f32.mrb[0].mxu0
    %v1777 = vadd.f32 %v1638, %v1776
    %v1778 = vpop.f32.mrb[0].mxu0
    %1779 = vmatprep.mubr.bf16.mxu0 0
    %1780 = vmatmul.mubr.bf16.gmra.mrb[0].mxu0 %v1677
    %v1781 = vpop.f32.mrb[0].mxu0
    %v1782 = vadd.f32 %v1638, %v1781
    %v1783 = vpop.f32.mrb[0].mxu0
    %v1784 = vpop.f32.mrb[0].mxu0
    %v1785 = vadd.f32 %v1638, %v1784
    %v1786 = vpop.f32.mrb[0].mxu0
    %1787 = vmatprep.mubr.bf16.mxu0 0
    %1788 = vmatmul.mubr.bf16.gmra.mrb[0].mxu0 %v1680
    %v1789 = vpop.f32.mrb[0].mxu0
    %v1790 = vadd.f32 %v1638, %v1789
    %v1791 = vpop.f32.mrb[0].mxu0
    %v1792 = vpop.f32.mrb[0].mxu0
    %v1793 = vadd.f32 %v1638, %v1792
    %v1794 = vpop.f32.mrb[0].mxu0
    %1795 = vmatprep.mubr.bf16.mxu0 0
    %1796 = vmatmul.mubr.bf16.gmra.mrb[0].mxu0 %v1683
    %v1797 = vpop.f32.mrb[0].mxu0
    %v1798 = vadd.f32 %v1638, %v1797
    %v1799 = vpop.f32.mrb[0].mxu0
    %v1800 = vpop.f32.mrb[0].mxu0
    %v1801 = vadd.f32 %v1638, %v1800
    %v1802 = vpop.f32.mrb[0].mxu0
    %1803 = vmatprep.mubr.bf16.mxu0 0
    %1804 = vmatmul.mubr.bf16.gmra.mrb[0].mxu0 %v1686
    %v1805 = vpop.f32.mrb[0].mxu0
    %v1806 = vadd.f32 %v1638, %v1805
    %v1807 = vpop.f32.mrb[0].mxu0
    %v1808 = vpop.f32.mrb[0].mxu0
    %v1809 = vadd.f32 %v1638, %v1808
    %v1810 = vpop.f32.mrb[0].mxu0
    %1811 = vmatprep.mubr.bf16.mxu0 0
    %1812 = vmatmul.mubr.bf16.gmra.mrb[0].mxu0 %v1689
    %v1813 = vpop.f32.mrb[0].mxu0
    %v1814 = vadd.f32 %v1638, %v1813
    %v1815 = vpop.f32.mrb[0].mxu0
    %v1816 = vpop.f32.mrb[0].mxu0
    %v1817 = vadd.f32 %v1638, %v1816
    %v1818 = vpop.f32.mrb[0].mxu0
    %1819 = vmatprep.mubr.bf16.mxu0 0
    %1820 = vmatmul.mubr.bf16.gmra.mrb[0].mxu0 %v1692
    %v1821 = vpop.f32.mrb[0].mxu0
    %v1822 = vadd.f32 %v1638, %v1821
    %v1823 = vpop.f32.mrb[0].mxu0
    %v1824 = vpop.f32.mrb[0].mxu0
    %v1825 = vadd.f32 %v1638, %v1824
    %v1826 = vpop.f32.mrb[0].mxu0
    %1827 = vmatprep.mubr.bf16.mxu0 0
    %1828 = vmatmul.mubr.bf16.gmra.mrb[0].mxu0 %v1695
    %v1829 = vpop.f32.mrb[0].mxu0
    %v1830 = vadd.f32 %v1638, %v1829
    %v1831 = vpop.f32.mrb[0].mxu0
    %v1832 = vpop.f32.mrb[0].mxu0
    %v1833 = vadd.f32 %v1638, %v1832
    %v1834 = vpop.f32.mrb[0].mxu0
    %1835 = vmatprep.mubr.bf16.mxu0 0
    %1836 = vmatmul.mubr.bf16.gmra.mrb[0].mxu0 %v1698
    %v1837 = vpop.f32.mrb[0].mxu0
    %v1838 = vadd.f32 %v1638, %v1837
    %v1839 = vpop.f32.mrb[0].mxu0
    %v1840 = vpop.f32.mrb[0].mxu0
    %v1841 = vadd.f32 %v1638, %v1840
    %v1842 = vpop.f32.mrb[0].mxu0
    %1843 = vmatprep.mubr.bf16.mxu0 0
    %1844 = vmatmul.mubr.bf16.gmra.mrb[0].mxu0 %v1701
    %v1845 = vpop.f32.mrb[0].mxu0
    %v1846 = vadd.f32 %v1638, %v1845
    %v1847 = vpop.f32.mrb[0].mxu0
    %v1848 = vpop.f32.mrb[0].mxu0
    %v1849 = vadd.f32 %v1638, %v1848
    %v1850 = vpop.f32.mrb[0].mxu0
    %1851 = vmatprep.mubr.bf16.mxu0 0
    %1852 = vmatmul.mubr.bf16.gmra.mrb[0].mxu0 %v1704
    %v1853 = vpop.f32.mrb[0].mxu0
    %v1854 = vadd.f32 %v1638, %v1853
    %v1855 = vpop.f32.mrb[0].mxu0
    %v1856 = vpop.f32.mrb[0].mxu0
    %v1857 = vadd.f32 %v1638, %v1856
    %v1858 = vpop.f32.mrb[0].mxu0
    %1859 = vmatprep.mubr.bf16.mxu0 0
    %1860 = vmatmul.mubr.bf16.gmra.mrb[0].mxu0 %v1707
    %v1861 = vpop.f32.mrb[0].mxu0
    %v1862 = vadd.f32 %v1638, %v1861
    %v1863 = vpop.f32.mrb[0].mxu0
    %v1864 = vpop.f32.mrb[0].mxu0
    %v1865 = vadd.f32 %v1638, %v1864
    %v1866 = vpop.f32.mrb[0].mxu0
    %1867 = vmatprep.mubr.bf16.mxu0 0
    %1868 = vmatmul.mubr.bf16.gmra.mrb[0].mxu0 %v1710
    %v1869 = vpop.f32.mrb[0].mxu0
    %v1870 = vadd.f32 %v1638, %v1869
    %v1871 = vpop.f32.mrb[0].mxu0
    %v1872 = vpop.f32.mrb[0].mxu0
    %v1873 = vadd.f32 %v1638, %v1872
    %v1874 = vpop.f32.mrb[0].mxu0
    %1875 = vmatprep.mubr.bf16.mxu0 0
    %1876 = vmatmul.mubr.bf16.gmra.mrb[0].mxu0 %v1713
    %v1877 = vpop.f32.mrb[0].mxu0
    %v1878 = vadd.f32 %v1638, %v1877
    %v1879 = vpop.f32.mrb[0].mxu0
    %v1880 = vpop.f32.mrb[0].mxu0
    %v1881 = vpop.f32.mrb[0].mxu0
    %1882 = vdwg.mxu0
    %1916 = vrot.lane.b32.xlu0 %v820, 64
    %v1917 = vpop.permute.xlu0 %1916
    %1918 = vrot.lane.b32.xlu0 %v823, 64
    %v1919 = vpop.permute.xlu0 %1918
    %1920 = vrot.lane.b32.xlu0 %v828, 64
    %v1921 = vpop.permute.xlu0 %1920
    %1922 = vrot.lane.b32.xlu0 %v831, 64
    %v1923 = vpop.permute.xlu0 %1922
    %1924 = vrot.lane.b32.xlu0 %v836, 64
    %v1925 = vpop.permute.xlu0 %1924
    %1926 = vrot.lane.b32.xlu0 %v839, 64
    %v1927 = vpop.permute.xlu0 %1926
    %1928 = vrot.lane.b32.xlu0 %v844, 64
    %v1929 = vpop.permute.xlu0 %1928
    %1930 = vrot.lane.b32.xlu0 %v847, 64
    %v1931 = vpop.permute.xlu0 %1930
    %1932 = vrot.lane.b32.xlu0 %v852, 64
    %v1933 = vpop.permute.xlu0 %1932
    %1934 = vrot.lane.b32.xlu0 %v855, 64
    %v1935 = vpop.permute.xlu0 %1934
    %1936 = vrot.lane.b32.xlu0 %v860, 64
    %v1937 = vpop.permute.xlu0 %1936
    %1938 = vrot.lane.b32.xlu0 %v863, 64
    %v1939 = vpop.permute.xlu0 %1938
    %1940 = vrot.lane.b32.xlu0 %v868, 64
    %v1941 = vpop.permute.xlu0 %1940
    %1942 = vrot.lane.b32.xlu0 %v871, 64
    %v1943 = vpop.permute.xlu0 %1942
    %1944 = vrot.lane.b32.xlu0 %v876, 64
    %v1945 = vpop.permute.xlu0 %1944
    %1946 = vrot.lane.b32.xlu0 %v879, 64
    %v1947 = vpop.permute.xlu0 %1946
    %1948 = vrot.lane.b32.xlu0 %v884, 64
    %v1949 = vpop.permute.xlu0 %1948
    %1950 = vrot.lane.b32.xlu0 %v887, 64
    %v1951 = vpop.permute.xlu0 %1950
    %1952 = vrot.lane.b32.xlu0 %v892, 64
    %v1953 = vpop.permute.xlu0 %1952
    %1954 = vrot.lane.b32.xlu0 %v895, 64
    %v1955 = vpop.permute.xlu0 %1954
    %1956 = vrot.lane.b32.xlu0 %v900, 64
    %v1957 = vpop.permute.xlu0 %1956
    %1958 = vrot.lane.b32.xlu0 %v903, 64
    %v1959 = vpop.permute.xlu0 %1958
    %1960 = vrot.lane.b32.xlu0 %v908, 64
    %v1961 = vpop.permute.xlu0 %1960
    %1962 = vrot.lane.b32.xlu0 %v911, 64
    %v1963 = vpop.permute.xlu0 %1962
    %1964 = vrot.lane.b32.xlu0 %v916, 64
    %v1965 = vpop.permute.xlu0 %1964
    %1966 = vrot.lane.b32.xlu0 %v919, 64
    %v1967 = vpop.permute.xlu0 %1966
    %1968 = vrot.lane.b32.xlu0 %v924, 64
    %v1969 = vpop.permute.xlu0 %1968
    %1970 = vrot.lane.b32.xlu0 %v927, 64
    %v1971 = vpop.permute.xlu0 %1970
    %1972 = vrot.lane.b32.xlu0 %v932, 64
    %v1973 = vpop.permute.xlu0 %1972
    %1974 = vrot.lane.b32.xlu0 %v935, 64
    %v1975 = vpop.permute.xlu0 %1974
    %1976 = vrot.lane.b32.xlu0 %v940, 64
    %v1977 = vpop.permute.xlu0 %1976
    %1978 = vrot.lane.b32.xlu0 %v943, 64
    %v1979 = vpop.permute.xlu0 %1978
    %1980 = vrot.lane.b32.xlu0 %v948, 64
    %v1981 = vpop.permute.xlu0 %1980
    %2015 = vrot.lane.b32.xlu0 %v1019, 64
    %v2016 = vpop.permute.xlu0 %2015
    %2017 = vrot.lane.b32.xlu0 %v1020, 64
    %v2018 = vpop.permute.xlu0 %2017
    %2019 = vrot.lane.b32.xlu0 %v1021, 64
    %v2020 = vpop.permute.xlu0 %2019
    %2021 = vrot.lane.b32.xlu0 %v1022, 64
    %v2022 = vpop.permute.xlu0 %2021
    %2023 = vrot.lane.b32.xlu0 %v1023, 64
    %v2024 = vpop.permute.xlu0 %2023
    %2025 = vrot.lane.b32.xlu0 %v1024, 64
    %v2026 = vpop.permute.xlu0 %2025
    %2027 = vrot.lane.b32.xlu0 %v1025, 64
    %v2028 = vpop.permute.xlu0 %2027
    %2029 = vrot.lane.b32.xlu0 %v1026, 64
    %v2030 = vpop.permute.xlu0 %2029
    %2031 = vrot.lane.b32.xlu0 %v1027, 64
    %v2032 = vpop.permute.xlu0 %2031
    %2033 = vrot.lane.b32.xlu0 %v1028, 64
    %v2034 = vpop.permute.xlu0 %2033
    %2035 = vrot.lane.b32.xlu0 %v1029, 64
    %v2036 = vpop.permute.xlu0 %2035
    %2037 = vrot.lane.b32.xlu0 %v1030, 64
    %v2038 = vpop.permute.xlu0 %2037
    %2039 = vrot.lane.b32.xlu0 %v1031, 64
    %v2040 = vpop.permute.xlu0 %2039
    %2041 = vrot.lane.b32.xlu0 %v1032, 64
    %v2042 = vpop.permute.xlu0 %2041
    %2043 = vrot.lane.b32.xlu0 %v1033, 64
    %v2044 = vpop.permute.xlu0 %2043
    %2045 = vrot.lane.b32.xlu0 %v1034, 64
    %v2046 = vpop.permute.xlu0 %2045
    %2047 = vrot.lane.b32.xlu0 %v1035, 64
    %v2048 = vpop.permute.xlu0 %2047
    %2049 = vrot.lane.b32.xlu0 %v1036, 64
    %v2050 = vpop.permute.xlu0 %2049
    %2051 = vrot.lane.b32.xlu0 %v1037, 64
    %v2052 = vpop.permute.xlu0 %2051
    %2053 = vrot.lane.b32.xlu0 %v1038, 64
    %v2054 = vpop.permute.xlu0 %2053
    %2055 = vrot.lane.b32.xlu0 %v1039, 64
    %v2056 = vpop.permute.xlu0 %2055
    %2057 = vrot.lane.b32.xlu0 %v1040, 64
    %v2058 = vpop.permute.xlu0 %2057
    %2059 = vrot.lane.b32.xlu0 %v1041, 64
    %v2060 = vpop.permute.xlu0 %2059
    %2061 = vrot.lane.b32.xlu0 %v1042, 64
    %v2062 = vpop.permute.xlu0 %2061
    %2063 = vrot.lane.b32.xlu0 %v1043, 64
    %v2064 = vpop.permute.xlu0 %2063
    %2065 = vrot.lane.b32.xlu0 %v1044, 64
    %v2066 = vpop.permute.xlu0 %2065
    %2067 = vrot.lane.b32.xlu0 %v1045, 64
    %v2068 = vpop.permute.xlu0 %2067
    %2069 = vrot.lane.b32.xlu0 %v1046, 64
    %v2070 = vpop.permute.xlu0 %2069
    %2071 = vrot.lane.b32.xlu0 %v1047, 64
    %v2072 = vpop.permute.xlu0 %2071
    %2073 = vrot.lane.b32.xlu0 %v1048, 64
    %v2074 = vpop.permute.xlu0 %2073
    %2075 = vrot.lane.b32.xlu0 %v1049, 64
    %v2076 = vpop.permute.xlu0 %2075
    %2077 = vrot.lane.b32.xlu0 %v1050, 64
    %v2078 = vpop.permute.xlu0 %2077
    %2079 = vrot.lane.b32.xlu0 %v1051, 64
    %v2080 = vpop.permute.xlu0 %2079
    %v2114 = vsel %vm132, %v1750, %v1917
    %v2115 = vsel %vm132, %v1753, %v1919
    %v2116 = vsel %vm132, %v1758, %v1921
    %v2117 = vsel %vm132, %v1761, %v1923
    %v2118 = vsel %vm132, %v1766, %v1925
    %v2119 = vsel %vm132, %v1769, %v1927
    %v2120 = vsel %vm132, %v1774, %v1929
    %v2121 = vsel %vm132, %v1777, %v1931
    %v2122 = vsel %vm132, %v1782, %v1933
    %v2123 = vsel %vm132, %v1785, %v1935
    %v2124 = vsel %vm132, %v1790, %v1937
    %v2125 = vsel %vm132, %v1793, %v1939
    %v2126 = vsel %vm132, %v1798, %v1941
    %v2127 = vsel %vm132, %v1801, %v1943
    %v2128 = vsel %vm132, %v1806, %v1945
    %v2129 = vsel %vm132, %v1809, %v1947
    %v2130 = vsel %vm132, %v1814, %v1949
    %v2131 = vsel %vm132, %v1817, %v1951
    %v2132 = vsel %vm132, %v1822, %v1953
    %v2133 = vsel %vm132, %v1825, %v1955
    %v2134 = vsel %vm132, %v1830, %v1957
    %v2135 = vsel %vm132, %v1833, %v1959
    %v2136 = vsel %vm132, %v1838, %v1961
    %v2137 = vsel %vm132, %v1841, %v1963
    %v2138 = vsel %vm132, %v1846, %v1965
    %v2139 = vsel %vm132, %v1849, %v1967
    %v2140 = vsel %vm132, %v1854, %v1969
    %v2141 = vsel %vm132, %v1857, %v1971
    %v2142 = vsel %vm132, %v1862, %v1973
    %v2143 = vsel %vm132, %v1865, %v1975
    %v2144 = vsel %vm132, %v1870, %v1977
    %v2145 = vsel %vm132, %v1873, %v1979
    %v2146 = vsel %vm132, %v1878, %v1981
    %vm2147 = vcmask 785408
    %v2148 = vsel %vm2147, %v2114, %v2016
    %v2149 = vsel %vm2147, %v2115, %v2018
    %v2150 = vsel %vm2147, %v2116, %v2020
    %v2151 = vsel %vm2147, %v2117, %v2022
    %v2152 = vsel %vm2147, %v2118, %v2024
    %v2153 = vsel %vm2147, %v2119, %v2026
    %v2154 = vsel %vm2147, %v2120, %v2028
    %v2155 = vsel %vm2147, %v2121, %v2030
    %v2156 = vsel %vm2147, %v2122, %v2032
    %v2157 = vsel %vm2147, %v2123, %v2034
    %v2158 = vsel %vm2147, %v2124, %v2036
    %v2159 = vsel %vm2147, %v2125, %v2038
    %v2160 = vsel %vm2147, %v2126, %v2040
    %v2161 = vsel %vm2147, %v2127, %v2042
    %v2162 = vsel %vm2147, %v2128, %v2044
    %v2163 = vsel %vm2147, %v2129, %v2046
    %v2164 = vsel %vm2147, %v2130, %v2048
    %v2165 = vsel %vm2147, %v2131, %v2050
    %v2166 = vsel %vm2147, %v2132, %v2052
    %v2167 = vsel %vm2147, %v2133, %v2054
    %v2168 = vsel %vm2147, %v2134, %v2056
    %v2169 = vsel %vm2147, %v2135, %v2058
    %v2170 = vsel %vm2147, %v2136, %v2060
    %v2171 = vsel %vm2147, %v2137, %v2062
    %v2172 = vsel %vm2147, %v2138, %v2064
    %v2173 = vsel %vm2147, %v2139, %v2066
    %v2174 = vsel %vm2147, %v2140, %v2068
    %v2175 = vsel %vm2147, %v2141, %v2070
    %v2176 = vsel %vm2147, %v2142, %v2072
    %v2177 = vsel %vm2147, %v2143, %v2074
    %v2178 = vsel %vm2147, %v2144, %v2076
    %v2179 = vsel %vm2147, %v2145, %v2078
    %v2180 = vsel %vm2147, %v2146, %v2080
    %v2181 = vpack.c.bf16 %v2149, %v2148
    %v2182 = vpack.c.bf16 %v2151, %v2150
    %v2183 = vpack.c.bf16 %v2153, %v2152
    %v2184 = vpack.c.bf16 %v2155, %v2154
    %v2185 = vpack.c.bf16 %v2157, %v2156
    %v2186 = vpack.c.bf16 %v2159, %v2158
    %v2187 = vpack.c.bf16 %v2161, %v2160
    %v2188 = vpack.c.bf16 %v2163, %v2162
    %v2189 = vpack.c.bf16 %v2165, %v2164
    %v2190 = vpack.c.bf16 %v2167, %v2166
    %v2191 = vpack.c.bf16 %v2169, %v2168
    %v2192 = vpack.c.bf16 %v2171, %v2170
    %v2193 = vpack.c.bf16 %v2173, %v2172
    %v2194 = vpack.c.bf16 %v2175, %v2174
    %v2195 = vpack.c.bf16 %v2177, %v2176
    %v2196 = vpack.c.bf16 %v2179, %v2178
    %v2197 = vpack.c.bf16 %v2180, %v2180
    %v2215 = vunpack.c.l.b16 %v2181
    %v2216 = vunpack.c.h.b16 %v2181
    %v2217 = vunpack.c.l.b16 %v2182
    %v2218 = vunpack.c.h.b16 %v2182
    %v2219 = vunpack.c.l.b16 %v2183
    %v2220 = vunpack.c.h.b16 %v2183
    %v2221 = vunpack.c.l.b16 %v2184
    %v2222 = vunpack.c.h.b16 %v2184
    %v2223 = vunpack.c.l.b16 %v2185
    %v2224 = vunpack.c.h.b16 %v2185
    %v2225 = vunpack.c.l.b16 %v2186
    %v2226 = vunpack.c.h.b16 %v2186
    %v2227 = vunpack.c.l.b16 %v2187
    %v2228 = vunpack.c.h.b16 %v2187
    %v2229 = vunpack.c.l.b16 %v2188
    %v2230 = vunpack.c.h.b16 %v2188
    %v2231 = vunpack.c.l.b16 %v2189
    %v2232 = vunpack.c.h.b16 %v2189
    %v2233 = vunpack.c.l.b16 %v2190
    %v2234 = vunpack.c.h.b16 %v2190
    %v2235 = vunpack.c.l.b16 %v2191
    %v2236 = vunpack.c.h.b16 %v2191
    %v2237 = vunpack.c.l.b16 %v2192
    %v2238 = vunpack.c.h.b16 %v2192
    %v2239 = vunpack.c.l.b16 %v2193
    %v2240 = vunpack.c.h.b16 %v2193
    %v2241 = vunpack.c.l.b16 %v2194
    %v2242 = vunpack.c.h.b16 %v2194
    %v2243 = vunpack.c.l.b16 %v2195
    %v2244 = vunpack.c.h.b16 %v2195
    %v2245 = vunpack.c.l.b16 %v2196
    %v2246 = vunpack.c.h.b16 %v2196
    %v2247 = vunpack.c.l.b16 %v2197
    %v2248 = vpack.c.b16 %v2215, %v2215
    %v2249 = vpack.c.b16 %v2216, %v2216
    %v2250 = vpack.c.b16 %v2217, %v2217
    %v2251 = vpack.c.b16 %v2218, %v2218
    %v2252 = vpack.c.b16 %v2219, %v2219
    %v2253 = vpack.c.b16 %v2220, %v2220
    %v2254 = vpack.c.b16 %v2221, %v2221
    %v2255 = vpack.c.b16 %v2222, %v2222
    %v2256 = vpack.c.b16 %v2223, %v2223
    %v2257 = vpack.c.b16 %v2224, %v2224
    %v2258 = vpack.c.b16 %v2225, %v2225
    %v2259 = vpack.c.b16 %v2226, %v2226
    %v2260 = vpack.c.b16 %v2227, %v2227
    %v2261 = vpack.c.b16 %v2228, %v2228
    %v2262 = vpack.c.b16 %v2229, %v2229
    %v2263 = vpack.c.b16 %v2230, %v2230
    %v2264 = vpack.c.b16 %v2231, %v2231
    %v2265 = vpack.c.b16 %v2232, %v2232
    %v2266 = vpack.c.b16 %v2233, %v2233
    %v2267 = vpack.c.b16 %v2234, %v2234
    %v2268 = vpack.c.b16 %v2235, %v2235
    %v2269 = vpack.c.b16 %v2236, %v2236
    %v2270 = vpack.c.b16 %v2237, %v2237
    %v2271 = vpack.c.b16 %v2238, %v2238
    %v2272 = vpack.c.b16 %v2239, %v2239
    %v2273 = vpack.c.b16 %v2240, %v2240
    %v2274 = vpack.c.b16 %v2241, %v2241
    %v2275 = vpack.c.b16 %v2242, %v2242
    %v2276 = vpack.c.b16 %v2243, %v2243
    %v2277 = vpack.c.b16 %v2244, %v2244
    %v2278 = vpack.c.b16 %v2245, %v2245
    %v2279 = vpack.c.b16 %v2246, %v2246
    %v2280 = vpack.c.b16 %v2247, %v2247
    %2314 = vst [vmem:[#allocation2] sm:$0xf] %v2248
    %2315 = vst [vmem:[#allocation2 + $0x4] sm:$0xf] %v2249
    %2316 = vst [vmem:[#allocation2 + $0x8] sm:$0xf] %v2250
    %2317 = vst [vmem:[#allocation2 + $0xc] sm:$0xf] %v2251
    %2318 = vst [vmem:[#allocation2 + $0x10] sm:$0xf] %v2252
    %2319 = vst [vmem:[#allocation2 + $0x14] sm:$0xf] %v2253
    %2320 = vst [vmem:[#allocation2 + $0x18] sm:$0xf] %v2254
    %2321 = vst [vmem:[#allocation2 + $0x1c] sm:$0xf] %v2255
    %2322 = vst [vmem:[#allocation2 + $0x20] sm:$0xf] %v2256
    %2323 = vst [vmem:[#allocation2 + $0x24] sm:$0xf] %v2257
    %2324 = vst [vmem:[#allocation2 + $0x28] sm:$0xf] %v2258
    %2325 = vst [vmem:[#allocation2 + $0x2c] sm:$0xf] %v2259
    %2326 = vst [vmem:[#allocation2 + $0x30] sm:$0xf] %v2260
    %2327 = vst [vmem:[#allocation2 + $0x34] sm:$0xf] %v2261
    %2328 = vst [vmem:[#allocation2 + $0x38] sm:$0xf] %v2262
    %2329 = vst [vmem:[#allocation2 + $0x3c] sm:$0xf] %v2263
    %2330 = vst [vmem:[#allocation2 + $0x40] sm:$0xf] %v2264
    %2331 = vst [vmem:[#allocation2 + $0x44] sm:$0xf] %v2265
    %2332 = vst [vmem:[#allocation2 + $0x48] sm:$0xf] %v2266
    %2333 = vst [vmem:[#allocation2 + $0x4c] sm:$0xf] %v2267
    %2334 = vst [vmem:[#allocation2 + $0x50] sm:$0xf] %v2268
    %2335 = vst [vmem:[#allocation2 + $0x54] sm:$0xf] %v2269
    %2336 = vst [vmem:[#allocation2 + $0x58] sm:$0xf] %v2270
    %2337 = vst [vmem:[#allocation2 + $0x5c] sm:$0xf] %v2271
    %2338 = vst [vmem:[#allocation2 + $0x60] sm:$0xf] %v2272
    %2339 = vst [vmem:[#allocation2 + $0x64] sm:$0xf] %v2273
    %2340 = vst [vmem:[#allocation2 + $0x68] sm:$0xf] %v2274
    %2341 = vst [vmem:[#allocation2 + $0x6c] sm:$0xf] %v2275
    %2342 = vst [vmem:[#allocation2 + $0x70] sm:$0xf] %v2276
    %2343 = vst [vmem:[#allocation2 + $0x74] sm:$0xf] %v2277
    %2344 = vst [vmem:[#allocation2 + $0x78] sm:$0xf] %v2278
    %2345 = vst [vmem:[#allocation2 + $0x7c] sm:$0xf] %v2279
    %2346 = vst [vmem:[#allocation2 + $0x80] sm:$0xf] %v2280
    // Predicated region
    $region50: #{tpu_custom_call.1} parent=1 // pred_check
      _
    $region51: #{tpu_custom_call.1} parent=1 // pred_check_branch
      %2348 = sbr.rel (0) target = $region53
    $region52: #{tpu_custom_call.1} parent=1 // pred_region
      %s2350 = ssub.s32 2112, 2112
      %2351 = vsyncadd [#allocation3], %s2350
      %s2352 = sshll.u32 [#allocation2], 4
      %s2353 = int_to_ptr.vmem [resolvable:$true] %s2352
      %2358 = dma.vmem_to_hbm [thread:$0]  %s2353, 2112, %s12, [#allocation3], 64, 64, 4
    $region53: #{tpu_custom_call.1} parent=1 // pred_fallthru
      _
    // Predicated region
    $region54: #{tpu_custom_call.1} parent=1 // pred_check
      _
    $region55: #{tpu_custom_call.1} parent=1 // pred_check_branch
      %2360 = sbr.rel (0) target = $region57
    $region56: #{tpu_custom_call.1} parent=1 // pred_region
      %2361 = dma.done [#allocation3], 2112
    $region57: #{tpu_custom_call.1} parent=1 // pred_fallthru
      _
    %2362 = vsyncpa [#allocation3], 1

</llo_original>
